<compile_context>
chip_gen: v5e
topology: v5e:2x2
jax: 0.10.0
libtpu: 0.0.40
codegen_flags: <defaults>
</compile_context>

<pallas_src>
import functools

import numpy as np
import jax
import jax.numpy as jnp
from jax import lax
from jax.experimental import pallas as pl
from jax.experimental.pallas import tpu as pltpu


def _round_up(x, m):
    return (x + m - 1) // m * m


# ----------------------------------------------------------------------------
# Fused encoder kernel (one grid step per batch element)
# ----------------------------------------------------------------------------
def _encoder_kernel(img_ref, msg_ref, mask_ref,
                    w0_ref, b0_ref, w1_ref, b1_ref, w2_ref, b2_ref,
                    w3_ref, b3_ref, wac_ref, bac_ref, wac2_ref, bac2_ref,
                    wf_ref, bf_ref, o_ref, *, W):
    Wp = W + 2
    SP = img_ref.shape[-1]                      # flat padded spatial extent
    mask = mask_ref[...]                        # (1, SP): 1.0 at interior cols

    def conv3x3_relu(p_flat, w_ref, b_ref):
        # p_flat: (Cin, SP) zero-padded activation.  im2col via 9 lane rolls
        # (XLU, nearly free) + ONE MXU matmul with lane-dense N = SP.  Output
        # columns are aligned at p = y*Wp + x.
        taps = []
        for ky in range(3):
            for kx in range(3):
                off = ky * Wp + kx
                taps.append(p_flat if off == 0
                            else pltpu.roll(p_flat, shift=SP - off, axis=1))
        patch = jnp.concatenate(taps, axis=0)                     # (9*Cin, SP)
        y = jnp.dot(w_ref[...], patch, preferred_element_type=jnp.float32)
        return jnp.maximum(y + b_ref[...], 0.0)                   # (Cout, SP)

    def repad(o_full):
        # conv-output alignment (p = y*Wp+x) -> next layer's zero-padded
        # alignment (q = (y+1)*Wp + (x+1)); halo / garbage columns -> 0.
        return pltpu.roll(o_full, shift=Wp + 1, axis=1) * mask

    img0 = img_ref[0]                                             # (Cpad, SP)

    x = repad(conv3x3_relu(img0, w0_ref, b0_ref))
    x = repad(conv3x3_relu(x, w1_ref, b1_ref))
    x = repad(conv3x3_relu(x, w2_ref, b2_ref))
    enc = conv3x3_relu(x, w3_ref, b3_ref)

    # torch.cat([expanded_message, encoded_image], dim=1), in padded layout.
    msg_pad = msg_ref[0] * mask                                   # (L, SP)
    cat = jnp.concatenate([msg_pad, repad(enc)], axis=0)          # (L+C, SP)

    x = repad(conv3x3_relu(cat, wac_ref, bac_ref))
    im_w = conv3x3_relu(x, wac2_ref, bac2_ref)                    # (C, SP)

    # final 1x1 conv over torch.cat([im_w, image], dim=1); align the image
    # (stored at interior columns) to the conv-output columns.
    img_aligned = pltpu.roll(img0, shift=SP - (Wp + 1), axis=1)   # (Cpad, SP)
    xf = jnp.concatenate([im_w, img_aligned], axis=0)             # (C+Cpad, SP)
    out = jnp.dot(wf_ref[...], xf,
                  preferred_element_type=jnp.float32) + bf_ref[...]
    o_ref[0] = out                                                # (3, SP)


# ----------------------------------------------------------------------------
# Weight folding: BN scale folded into conv weights, reshaped to the
# channel-major im2col layout (Cout, 9*Cin); bias as (Cout, 1).
# ----------------------------------------------------------------------------
def _fold_cbr(p, cin_pad=None):
    w = p["w"] * p["scale"][None, None, None, :]            # (3,3,Cin,Cout) HWIO
    if cin_pad is not None and cin_pad > w.shape[2]:
        w = jnp.pad(w, ((0, 0), (0, 0), (0, cin_pad - w.shape[2]), (0, 0)))
    cout = w.shape[3]
    wm = jnp.transpose(w, (3, 0, 1, 2)).reshape(cout, -1)    # (Cout, 9*Cin)
    b = p["bias"].reshape(cout, 1)                           # (Cout, 1)
    return wm, b


# ----------------------------------------------------------------------------
# Encoder forward: one fused pallas_call
# ----------------------------------------------------------------------------
@jax.jit
def encoder_forward(image_nchw, message, params):
    image_nchw = image_nchw.astype(jnp.float32)
    B, Cimg, H, W = image_nchw.shape
    L = message.shape[1]
    Cpad = _round_up(Cimg, 8)            # pad image channels -> aligned concat
    S_real = (H + 2) * (W + 2)
    SP = _round_up(S_real, 128)          # lane-dense flat spatial extent

    # zero-padded, channel-padded, flat-spatial image: (B, Cpad, SP)
    img = jnp.pad(image_nchw, ((0, 0), (0, Cpad - Cimg), (1, 1), (1, 1)))
    img = img.reshape(B, Cpad, S_real)
    img = jnp.pad(img, ((0, 0), (0, 0), (0, SP - S_real)))

    msg = message.astype(jnp.float32).reshape(B, L, 1)

    # static interior mask: 1 at columns q = (y+1)*(W+2)+(x+1), else 0.
    m = np.zeros((H + 2, W + 2), np.float32)
    m[1:H + 1, 1:W + 1] = 1.0
    mask = jnp.asarray(np.pad(m.reshape(1, -1), ((0, 0), (0, SP - S_real))))

    w0, b0 = _fold_cbr(params["conv_layers"][0], cin_pad=Cpad)
    w1, b1 = _fold_cbr(params["conv_layers"][1])
    w2, b2 = _fold_cbr(params["conv_layers"][2])
    w3, b3 = _fold_cbr(params["conv_layers"][3])
    wac, bac = _fold_cbr(params["after_concat"])
    wac2, bac2 = _fold_cbr(params["after_concat2"])
    wf = params["final"]["w"]                                # (C+3, 3)
    wf = jnp.pad(wf, ((0, Cpad - Cimg), (0, 0)))             # zeros for pad chans
    wf = jnp.transpose(wf, (1, 0))                           # (3, C+Cpad)
    bf = params["final"]["b"].reshape(-1, 1)                 # (3, 1)

    weights = [w0, b0, w1, b1, w2, b2, w3, b3, wac, bac, wac2, bac2, wf, bf]
    full_spec = lambda a: pl.BlockSpec(a.shape, lambda b: (0,) * a.ndim)

    out_full = pl.pallas_call(
        functools.partial(_encoder_kernel, W=W),
        out_shape=jax.ShapeDtypeStruct((B, 3, SP), jnp.float32),
        grid=(B,),
        in_specs=[
            pl.BlockSpec((1, Cpad, SP), lambda b: (b, 0, 0)),   # image
            pl.BlockSpec((1, L, 1), lambda b: (b, 0, 0)),       # message
            pl.BlockSpec((1, SP), lambda b: (0, 0)),            # interior mask
        ] + [full_spec(a) for a in weights],
        out_specs=pl.BlockSpec((1, 3, SP), lambda b: (b, 0, 0)),
        compiler_params=pltpu.CompilerParams(
            dimension_semantics=("parallel",)),                 # both TCs on v7x
    )(img, msg, mask, *weights)

    # crop flat padded layout back to (B, 3, H, W) -- already NCHW.
    out = out_full[:, :, :S_real].reshape(B, 3, H + 2, W + 2)[:, :, :H, :W]
    return out


# ----------------------------------------------------------------------------
# Parameter construction (deterministic, synthetic)
# ----------------------------------------------------------------------------
def _make_convbnrelu_params(key, cin, cout, eps=1e-5):
    kw, kb, kg, kbeta = jax.random.split(key, 4)
    w = jax.random.normal(kw, (3, 3, cin, cout), jnp.float32) * 0.1   # HWIO
    conv_b = jax.random.normal(kb, (cout,), jnp.float32) * 0.1
    gamma = 1.0 + 0.1 * jax.random.normal(kg, (cout,), jnp.float32)
    beta = 0.1 * jax.random.normal(kbeta, (cout,), jnp.float32)
    running_mean = jnp.zeros((cout,), jnp.float32)
    running_var = jnp.ones((cout,), jnp.float32)
    scale = gamma / jnp.sqrt(running_var + eps)
    bias = (conv_b - running_mean) * scale + beta
    return {"w": w, "scale": scale, "bias": bias}


def make_encoder_params(key, conv_channels, redundant_length):
    keys = jax.random.split(key, 8)
    params = {}
    params["conv_layers"] = [
        _make_convbnrelu_params(keys[0], 3, conv_channels),
        _make_convbnrelu_params(keys[1], conv_channels, conv_channels),
        _make_convbnrelu_params(keys[2], conv_channels, conv_channels),
        _make_convbnrelu_params(keys[3], conv_channels, conv_channels),
    ]
    params["after_concat"] = _make_convbnrelu_params(
        keys[4], conv_channels + redundant_length, conv_channels)
    params["after_concat2"] = _make_convbnrelu_params(
        keys[5], conv_channels, conv_channels)
    params["final"] = {
        "w": jax.random.normal(keys[6], (conv_channels + 3, 3), jnp.float32) * 0.1,
        "b": jax.random.normal(keys[7], (3,), jnp.float32) * 0.1,
    }
    return params


# ----------------------------------------------------------------------------
# Pure-JAX reference (correctness check)
# ----------------------------------------------------------------------------
def _ref_conv3x3_bn_relu(x, w, scale, bias):
    y = lax.conv_general_dilated(
        x, w, window_strides=(1, 1), padding=((1, 1), (1, 1)),
        dimension_numbers=("NHWC", "HWIO", "NHWC"))
    return jnp.maximum(y * scale + bias, 0.0)


def encoder_forward_ref(image_nchw, message, params):
    img = jnp.transpose(image_nchw, (0, 2, 3, 1)).astype(jnp.float32)
    B, H, W, _ = img.shape
    L = message.shape[1]
    x = img
    for p in params["conv_layers"]:
        x = _ref_conv3x3_bn_relu(x, p["w"], p["scale"], p["bias"])
    msg = jnp.broadcast_to(message.astype(jnp.float32)[:, None, None, :],
                           (B, H, W, L))
    x = jnp.concatenate([msg, x], axis=-1)
    p = params["after_concat"]
    x = _ref_conv3x3_bn_relu(x, p["w"], p["scale"], p["bias"])
    p = params["after_concat2"]
    x = _ref_conv3x3_bn_relu(x, p["w"], p["scale"], p["bias"])
    x = jnp.concatenate([x, img], axis=-1)
    out = jnp.einsum("bhwc,co->bhwo", x, params["final"]["w"]) + params["final"]["b"]
    return jnp.transpose(out, (0, 3, 1, 2))


# ----------------------------------------------------------------------------
if __name__ == "__main__":
    # FLAGS: image_size=16, encoder_channels=16, encoder_blocks=4, redundant_length=8
    B, H, W = 2, 16, 16
    CONV_CHANNELS = 16
    REDUNDANT_LENGTH = 8

    key = jax.random.PRNGKey(0)
    k_img, k_msg, k_params = jax.random.split(key, 3)

    image = jax.random.normal(k_img, (B, 3, H, W), jnp.float32)       # NCHW
    message = jax.random.bernoulli(
        k_msg, 0.5, (B, REDUNDANT_LENGTH)).astype(jnp.float32)        # (B, L)

    params = make_encoder_params(k_params, CONV_CHANNELS, REDUNDANT_LENGTH)

    out = encoder_forward(image, message, params)
    out = jax.block_until_ready(out)

    ref = encoder_forward_ref(image, message, params)
    assert out.shape == (B, 3, H, W)
    assert jnp.allclose(out, ref, atol=1e-4, rtol=1e-4)

    print("KERNEL_OK")
</pallas_src>

<mosaic_0001>
module attributes {stable_mosaic.version = 11 : i64} {
  func.func @_encoder_kernel(%arg0: i32, %arg1: memref<1x8x384xf32, #tpu.memory_space<vmem>>, %arg2: memref<1x8x1xf32, #tpu.memory_space<vmem>>, %arg3: memref<1x384xf32, #tpu.memory_space<vmem>>, %arg4: memref<16x72xf32, #tpu.memory_space<vmem>>, %arg5: memref<16x1xf32, #tpu.memory_space<vmem>>, %arg6: memref<16x144xf32, #tpu.memory_space<vmem>>, %arg7: memref<16x1xf32, #tpu.memory_space<vmem>>, %arg8: memref<16x144xf32, #tpu.memory_space<vmem>>, %arg9: memref<16x1xf32, #tpu.memory_space<vmem>>, %arg10: memref<16x144xf32, #tpu.memory_space<vmem>>, %arg11: memref<16x1xf32, #tpu.memory_space<vmem>>, %arg12: memref<16x216xf32, #tpu.memory_space<vmem>>, %arg13: memref<16x1xf32, #tpu.memory_space<vmem>>, %arg14: memref<16x144xf32, #tpu.memory_space<vmem>>, %arg15: memref<16x1xf32, #tpu.memory_space<vmem>>, %arg16: memref<3x24xf32, #tpu.memory_space<vmem>>, %arg17: memref<3x1xf32, #tpu.memory_space<vmem>>, %arg18: memref<1x3x384xf32, #tpu.memory_space<vmem>>) attributes {dimension_semantics = [#tpu.dimension_semantics<parallel>], iteration_bounds = array<i64: 2>, scalar_prefetch = 0 : i64, scratch_operands = 0 : i64, tpu.core_type = #tpu.core_type<tc>, window_params = [{transform_indices = @transform_0, window_bounds = array<i64: 1, 8, 384>}, {transform_indices = @transform_1, window_bounds = array<i64: 1, 8, 1>}, {pipeline_mode = #tpu.pipeline_mode<synchronous>, transform_indices = @transform_2, window_bounds = array<i64: 1, 384>}, {pipeline_mode = #tpu.pipeline_mode<synchronous>, transform_indices = @transform_3, window_bounds = array<i64: 16, 72>}, {pipeline_mode = #tpu.pipeline_mode<synchronous>, transform_indices = @transform_4, window_bounds = array<i64: 16, 1>}, {pipeline_mode = #tpu.pipeline_mode<synchronous>, transform_indices = @transform_5, window_bounds = array<i64: 16, 144>}, {pipeline_mode = #tpu.pipeline_mode<synchronous>, transform_indices = @transform_6, window_bounds = array<i64: 16, 1>}, {pipeline_mode = #tpu.pipeline_mode<synchronous>, transform_indices = @transform_7, window_bounds = array<i64: 16, 144>}, {pipeline_mode = #tpu.pipeline_mode<synchronous>, transform_indices = @transform_8, window_bounds = array<i64: 16, 1>}, {pipeline_mode = #tpu.pipeline_mode<synchronous>, transform_indices = @transform_9, window_bounds = array<i64: 16, 144>}, {pipeline_mode = #tpu.pipeline_mode<synchronous>, transform_indices = @transform_10, window_bounds = array<i64: 16, 1>}, {pipeline_mode = #tpu.pipeline_mode<synchronous>, transform_indices = @transform_11, window_bounds = array<i64: 16, 216>}, {pipeline_mode = #tpu.pipeline_mode<synchronous>, transform_indices = @transform_12, window_bounds = array<i64: 16, 1>}, {pipeline_mode = #tpu.pipeline_mode<synchronous>, transform_indices = @transform_13, window_bounds = array<i64: 16, 144>}, {pipeline_mode = #tpu.pipeline_mode<synchronous>, transform_indices = @transform_14, window_bounds = array<i64: 16, 1>}, {pipeline_mode = #tpu.pipeline_mode<synchronous>, transform_indices = @transform_15, window_bounds = array<i64: 3, 24>}, {pipeline_mode = #tpu.pipeline_mode<synchronous>, transform_indices = @transform_16, window_bounds = array<i64: 3, 1>}, {transform_indices = @transform_17, window_bounds = array<i64: 1, 3, 384>}]} {
    %c0 = arith.constant 0 : index
    %c0_0 = arith.constant 0 : index
    %0 = vector.load %arg3[%c0, %c0_0] : memref<1x384xf32, #tpu.memory_space<vmem>>, vector<1x384xf32>
    %c0_1 = arith.constant 0 : index
    %c0_2 = arith.constant 0 : index
    %c0_3 = arith.constant 0 : index
    %1 = vector.load %arg1[%c0_1, %c0_2, %c0_3] : memref<1x8x384xf32, #tpu.memory_space<vmem>>, vector<1x8x384xf32>
    %2 = vector.shape_cast %1 : vector<1x8x384xf32> to vector<8x384xf32>
    %c383_i32 = arith.constant 383 : i32
    %3 = tpu.dynamic_rotate %2 by %c383_i32 dim 1 : vector<8x384xf32>, i32 -> vector<8x384xf32>
    %c382_i32 = arith.constant 382 : i32
    %4 = tpu.dynamic_rotate %2 by %c382_i32 dim 1 : vector<8x384xf32>, i32 -> vector<8x384xf32>
    %c366_i32 = arith.constant 366 : i32
    %5 = tpu.dynamic_rotate %2 by %c366_i32 dim 1 : vector<8x384xf32>, i32 -> vector<8x384xf32>
    %c365_i32 = arith.constant 365 : i32
    %6 = tpu.dynamic_rotate %2 by %c365_i32 dim 1 : vector<8x384xf32>, i32 -> vector<8x384xf32>
    %c364_i32 = arith.constant 364 : i32
    %7 = tpu.dynamic_rotate %2 by %c364_i32 dim 1 : vector<8x384xf32>, i32 -> vector<8x384xf32>
    %c348_i32 = arith.constant 348 : i32
    %8 = tpu.dynamic_rotate %2 by %c348_i32 dim 1 : vector<8x384xf32>, i32 -> vector<8x384xf32>
    %c347_i32 = arith.constant 347 : i32
    %9 = tpu.dynamic_rotate %2 by %c347_i32 dim 1 : vector<8x384xf32>, i32 -> vector<8x384xf32>
    %c346_i32 = arith.constant 346 : i32
    %10 = tpu.dynamic_rotate %2 by %c346_i32 dim 1 : vector<8x384xf32>, i32 -> vector<8x384xf32>
    %11 = tpu.concatenate %2, %3, %4, %5, %6, %7, %8, %9, %10 in 0 : vector<8x384xf32>, vector<8x384xf32>, vector<8x384xf32>, vector<8x384xf32>, vector<8x384xf32>, vector<8x384xf32>, vector<8x384xf32>, vector<8x384xf32>, vector<8x384xf32> -> vector<72x384xf32>
    %c0_4 = arith.constant 0 : index
    %c0_5 = arith.constant 0 : index
    %12 = vector.load %arg4[%c0_4, %c0_5] : memref<16x72xf32, #tpu.memory_space<vmem>>, vector<16x72xf32>
    %cst = arith.constant dense<0.000000e+00> : vector<16x384xf32>
    %13 = tpu.matmul %12, %11, %cst {dimension_numbers = #tpu.dot_dimension_numbers<[1], [0], [0], [1], [0, 0, 1, 1], [], []>} : vector<16x72xf32>, vector<72x384xf32>, vector<16x384xf32> -> vector<16x384xf32>
    %c0_6 = arith.constant 0 : index
    %c0_7 = arith.constant 0 : index
    %14 = vector.load %arg5[%c0_6, %c0_7] : memref<16x1xf32, #tpu.memory_space<vmem>>, vector<16x1xf32>
    %15 = vector.broadcast %14 : vector<16x1xf32> to vector<16x384xf32>
    %16 = arith.addf %13, %15 : vector<16x384xf32>
    %cst_8 = arith.constant 0.000000e+00 : f32
    %17 = vector.broadcast %cst_8 : f32 to vector<16x384xf32>
    %18 = arith.maximumf %16, %17 : vector<16x384xf32>
    %c19_i32 = arith.constant 19 : i32
    %19 = tpu.dynamic_rotate %18 by %c19_i32 dim 1 : vector<16x384xf32>, i32 -> vector<16x384xf32>
    %20 = vector.broadcast %0 : vector<1x384xf32> to vector<16x384xf32>
    %21 = arith.mulf %19, %20 : vector<16x384xf32>
    %c383_i32_9 = arith.constant 383 : i32
    %22 = tpu.dynamic_rotate %21 by %c383_i32_9 dim 1 : vector<16x384xf32>, i32 -> vector<16x384xf32>
    %c382_i32_10 = arith.constant 382 : i32
    %23 = tpu.dynamic_rotate %21 by %c382_i32_10 dim 1 : vector<16x384xf32>, i32 -> vector<16x384xf32>
    %c366_i32_11 = arith.constant 366 : i32
    %24 = tpu.dynamic_rotate %21 by %c366_i32_11 dim 1 : vector<16x384xf32>, i32 -> vector<16x384xf32>
    %c365_i32_12 = arith.constant 365 : i32
    %25 = tpu.dynamic_rotate %21 by %c365_i32_12 dim 1 : vector<16x384xf32>, i32 -> vector<16x384xf32>
    %c364_i32_13 = arith.constant 364 : i32
    %26 = tpu.dynamic_rotate %21 by %c364_i32_13 dim 1 : vector<16x384xf32>, i32 -> vector<16x384xf32>
    %c348_i32_14 = arith.constant 348 : i32
    %27 = tpu.dynamic_rotate %21 by %c348_i32_14 dim 1 : vector<16x384xf32>, i32 -> vector<16x384xf32>
    %c347_i32_15 = arith.constant 347 : i32
    %28 = tpu.dynamic_rotate %21 by %c347_i32_15 dim 1 : vector<16x384xf32>, i32 -> vector<16x384xf32>
    %c346_i32_16 = arith.constant 346 : i32
    %29 = tpu.dynamic_rotate %21 by %c346_i32_16 dim 1 : vector<16x384xf32>, i32 -> vector<16x384xf32>
    %30 = tpu.concatenate %21, %22, %23, %24, %25, %26, %27, %28, %29 in 0 : vector<16x384xf32>, vector<16x384xf32>, vector<16x384xf32>, vector<16x384xf32>, vector<16x384xf32>, vector<16x384xf32>, vector<16x384xf32>, vector<16x384xf32>, vector<16x384xf32> -> vector<144x384xf32>
    %c0_17 = arith.constant 0 : index
    %c0_18 = arith.constant 0 : index
    %31 = vector.load %arg6[%c0_17, %c0_18] : memref<16x144xf32, #tpu.memory_space<vmem>>, vector<16x144xf32>
    %cst_19 = arith.constant dense<0.000000e+00> : vector<16x384xf32>
    %32 = tpu.matmul %31, %30, %cst_19 {dimension_numbers = #tpu.dot_dimension_numbers<[1], [0], [0], [1], [0, 0, 1, 1], [], []>} : vector<16x144xf32>, vector<144x384xf32>, vector<16x384xf32> -> vector<16x384xf32>
    %c0_20 = arith.constant 0 : index
    %c0_21 = arith.constant 0 : index
    %33 = vector.load %arg7[%c0_20, %c0_21] : memref<16x1xf32, #tpu.memory_space<vmem>>, vector<16x1xf32>
    %34 = vector.broadcast %33 : vector<16x1xf32> to vector<16x384xf32>
    %35 = arith.addf %32, %34 : vector<16x384xf32>
    %cst_22 = arith.constant 0.000000e+00 : f32
    %36 = vector.broadcast %cst_22 : f32 to vector<16x384xf32>
    %37 = arith.maximumf %35, %36 : vector<16x384xf32>
    %c19_i32_23 = arith.constant 19 : i32
    %38 = tpu.dynamic_rotate %37 by %c19_i32_23 dim 1 : vector<16x384xf32>, i32 -> vector<16x384xf32>
    %39 = vector.broadcast %0 : vector<1x384xf32> to vector<16x384xf32>
    %40 = arith.mulf %38, %39 : vector<16x384xf32>
    %c383_i32_24 = arith.constant 383 : i32
    %41 = tpu.dynamic_rotate %40 by %c383_i32_24 dim 1 : vector<16x384xf32>, i32 -> vector<16x384xf32>
    %c382_i32_25 = arith.constant 382 : i32
    %42 = tpu.dynamic_rotate %40 by %c382_i32_25 dim 1 : vector<16x384xf32>, i32 -> vector<16x384xf32>
    %c366_i32_26 = arith.constant 366 : i32
    %43 = tpu.dynamic_rotate %40 by %c366_i32_26 dim 1 : vector<16x384xf32>, i32 -> vector<16x384xf32>
    %c365_i32_27 = arith.constant 365 : i32
    %44 = tpu.dynamic_rotate %40 by %c365_i32_27 dim 1 : vector<16x384xf32>, i32 -> vector<16x384xf32>
    %c364_i32_28 = arith.constant 364 : i32
    %45 = tpu.dynamic_rotate %40 by %c364_i32_28 dim 1 : vector<16x384xf32>, i32 -> vector<16x384xf32>
    %c348_i32_29 = arith.constant 348 : i32
    %46 = tpu.dynamic_rotate %40 by %c348_i32_29 dim 1 : vector<16x384xf32>, i32 -> vector<16x384xf32>
    %c347_i32_30 = arith.constant 347 : i32
    %47 = tpu.dynamic_rotate %40 by %c347_i32_30 dim 1 : vector<16x384xf32>, i32 -> vector<16x384xf32>
    %c346_i32_31 = arith.constant 346 : i32
    %48 = tpu.dynamic_rotate %40 by %c346_i32_31 dim 1 : vector<16x384xf32>, i32 -> vector<16x384xf32>
    %49 = tpu.concatenate %40, %41, %42, %43, %44, %45, %46, %47, %48 in 0 : vector<16x384xf32>, vector<16x384xf32>, vector<16x384xf32>, vector<16x384xf32>, vector<16x384xf32>, vector<16x384xf32>, vector<16x384xf32>, vector<16x384xf32>, vector<16x384xf32> -> vector<144x384xf32>
    %c0_32 = arith.constant 0 : index
    %c0_33 = arith.constant 0 : index
    %50 = vector.load %arg8[%c0_32, %c0_33] : memref<16x144xf32, #tpu.memory_space<vmem>>, vector<16x144xf32>
    %cst_34 = arith.constant dense<0.000000e+00> : vector<16x384xf32>
    %51 = tpu.matmul %50, %49, %cst_34 {dimension_numbers = #tpu.dot_dimension_numbers<[1], [0], [0], [1], [0, 0, 1, 1], [], []>} : vector<16x144xf32>, vector<144x384xf32>, vector<16x384xf32> -> vector<16x384xf32>
    %c0_35 = arith.constant 0 : index
    %c0_36 = arith.constant 0 : index
    %52 = vector.load %arg9[%c0_35, %c0_36] : memref<16x1xf32, #tpu.memory_space<vmem>>, vector<16x1xf32>
    %53 = vector.broadcast %52 : vector<16x1xf32> to vector<16x384xf32>
    %54 = arith.addf %51, %53 : vector<16x384xf32>
    %cst_37 = arith.constant 0.000000e+00 : f32
    %55 = vector.broadcast %cst_37 : f32 to vector<16x384xf32>
    %56 = arith.maximumf %54, %55 : vector<16x384xf32>
    %c19_i32_38 = arith.constant 19 : i32
    %57 = tpu.dynamic_rotate %56 by %c19_i32_38 dim 1 : vector<16x384xf32>, i32 -> vector<16x384xf32>
    %58 = vector.broadcast %0 : vector<1x384xf32> to vector<16x384xf32>
    %59 = arith.mulf %57, %58 : vector<16x384xf32>
    %c383_i32_39 = arith.constant 383 : i32
    %60 = tpu.dynamic_rotate %59 by %c383_i32_39 dim 1 : vector<16x384xf32>, i32 -> vector<16x384xf32>
    %c382_i32_40 = arith.constant 382 : i32
    %61 = tpu.dynamic_rotate %59 by %c382_i32_40 dim 1 : vector<16x384xf32>, i32 -> vector<16x384xf32>
    %c366_i32_41 = arith.constant 366 : i32
    %62 = tpu.dynamic_rotate %59 by %c366_i32_41 dim 1 : vector<16x384xf32>, i32 -> vector<16x384xf32>
    %c365_i32_42 = arith.constant 365 : i32
    %63 = tpu.dynamic_rotate %59 by %c365_i32_42 dim 1 : vector<16x384xf32>, i32 -> vector<16x384xf32>
    %c364_i32_43 = arith.constant 364 : i32
    %64 = tpu.dynamic_rotate %59 by %c364_i32_43 dim 1 : vector<16x384xf32>, i32 -> vector<16x384xf32>
    %c348_i32_44 = arith.constant 348 : i32
    %65 = tpu.dynamic_rotate %59 by %c348_i32_44 dim 1 : vector<16x384xf32>, i32 -> vector<16x384xf32>
    %c347_i32_45 = arith.constant 347 : i32
    %66 = tpu.dynamic_rotate %59 by %c347_i32_45 dim 1 : vector<16x384xf32>, i32 -> vector<16x384xf32>
    %c346_i32_46 = arith.constant 346 : i32
    %67 = tpu.dynamic_rotate %59 by %c346_i32_46 dim 1 : vector<16x384xf32>, i32 -> vector<16x384xf32>
    %68 = tpu.concatenate %59, %60, %61, %62, %63, %64, %65, %66, %67 in 0 : vector<16x384xf32>, vector<16x384xf32>, vector<16x384xf32>, vector<16x384xf32>, vector<16x384xf32>, vector<16x384xf32>, vector<16x384xf32>, vector<16x384xf32>, vector<16x384xf32> -> vector<144x384xf32>
    %c0_47 = arith.constant 0 : index
    %c0_48 = arith.constant 0 : index
    %69 = vector.load %arg10[%c0_47, %c0_48] : memref<16x144xf32, #tpu.memory_space<vmem>>, vector<16x144xf32>
    %cst_49 = arith.constant dense<0.000000e+00> : vector<16x384xf32>
    %70 = tpu.matmul %69, %68, %cst_49 {dimension_numbers = #tpu.dot_dimension_numbers<[1], [0], [0], [1], [0, 0, 1, 1], [], []>} : vector<16x144xf32>, vector<144x384xf32>, vector<16x384xf32> -> vector<16x384xf32>
    %c0_50 = arith.constant 0 : index
    %c0_51 = arith.constant 0 : index
    %71 = vector.load %arg11[%c0_50, %c0_51] : memref<16x1xf32, #tpu.memory_space<vmem>>, vector<16x1xf32>
    %72 = vector.broadcast %71 : vector<16x1xf32> to vector<16x384xf32>
    %73 = arith.addf %70, %72 : vector<16x384xf32>
    %cst_52 = arith.constant 0.000000e+00 : f32
    %74 = vector.broadcast %cst_52 : f32 to vector<16x384xf32>
    %75 = arith.maximumf %73, %74 : vector<16x384xf32>
    %c0_53 = arith.constant 0 : index
    %c0_54 = arith.constant 0 : index
    %c0_55 = arith.constant 0 : index
    %76 = vector.load %arg2[%c0_53, %c0_54, %c0_55] : memref<1x8x1xf32, #tpu.memory_space<vmem>>, vector<1x8x1xf32>
    %77 = vector.shape_cast %76 : vector<1x8x1xf32> to vector<8x1xf32>
    %78 = vector.broadcast %77 : vector<8x1xf32> to vector<8x384xf32>
    %79 = vector.broadcast %0 : vector<1x384xf32> to vector<8x384xf32>
    %80 = arith.mulf %78, %79 : vector<8x384xf32>
    %c19_i32_56 = arith.constant 19 : i32
    %81 = tpu.dynamic_rotate %75 by %c19_i32_56 dim 1 : vector<16x384xf32>, i32 -> vector<16x384xf32>
    %82 = vector.broadcast %0 : vector<1x384xf32> to vector<16x384xf32>
    %83 = arith.mulf %81, %82 : vector<16x384xf32>
    %84 = tpu.concatenate %80, %83 in 0 : vector<8x384xf32>, vector<16x384xf32> -> vector<24x384xf32>
    %c383_i32_57 = arith.constant 383 : i32
    %85 = tpu.dynamic_rotate %84 by %c383_i32_57 dim 1 : vector<24x384xf32>, i32 -> vector<24x384xf32>
    %c382_i32_58 = arith.constant 382 : i32
    %86 = tpu.dynamic_rotate %84 by %c382_i32_58 dim 1 : vector<24x384xf32>, i32 -> vector<24x384xf32>
    %c366_i32_59 = arith.constant 366 : i32
    %87 = tpu.dynamic_rotate %84 by %c366_i32_59 dim 1 : vector<24x384xf32>, i32 -> vector<24x384xf32>
    %c365_i32_60 = arith.constant 365 : i32
    %88 = tpu.dynamic_rotate %84 by %c365_i32_60 dim 1 : vector<24x384xf32>, i32 -> vector<24x384xf32>
    %c364_i32_61 = arith.constant 364 : i32
    %89 = tpu.dynamic_rotate %84 by %c364_i32_61 dim 1 : vector<24x384xf32>, i32 -> vector<24x384xf32>
    %c348_i32_62 = arith.constant 348 : i32
    %90 = tpu.dynamic_rotate %84 by %c348_i32_62 dim 1 : vector<24x384xf32>, i32 -> vector<24x384xf32>
    %c347_i32_63 = arith.constant 347 : i32
    %91 = tpu.dynamic_rotate %84 by %c347_i32_63 dim 1 : vector<24x384xf32>, i32 -> vector<24x384xf32>
    %c346_i32_64 = arith.constant 346 : i32
    %92 = tpu.dynamic_rotate %84 by %c346_i32_64 dim 1 : vector<24x384xf32>, i32 -> vector<24x384xf32>
    %93 = tpu.concatenate %84, %85, %86, %87, %88, %89, %90, %91, %92 in 0 : vector<24x384xf32>, vector<24x384xf32>, vector<24x384xf32>, vector<24x384xf32>, vector<24x384xf32>, vector<24x384xf32>, vector<24x384xf32>, vector<24x384xf32>, vector<24x384xf32> -> vector<216x384xf32>
    %c0_65 = arith.constant 0 : index
    %c0_66 = arith.constant 0 : index
    %94 = vector.load %arg12[%c0_65, %c0_66] : memref<16x216xf32, #tpu.memory_space<vmem>>, vector<16x216xf32>
    %cst_67 = arith.constant dense<0.000000e+00> : vector<16x384xf32>
    %95 = tpu.matmul %94, %93, %cst_67 {dimension_numbers = #tpu.dot_dimension_numbers<[1], [0], [0], [1], [0, 0, 1, 1], [], []>} : vector<16x216xf32>, vector<216x384xf32>, vector<16x384xf32> -> vector<16x384xf32>
    %c0_68 = arith.constant 0 : index
    %c0_69 = arith.constant 0 : index
    %96 = vector.load %arg13[%c0_68, %c0_69] : memref<16x1xf32, #tpu.memory_space<vmem>>, vector<16x1xf32>
    %97 = vector.broadcast %96 : vector<16x1xf32> to vector<16x384xf32>
    %98 = arith.addf %95, %97 : vector<16x384xf32>
    %cst_70 = arith.constant 0.000000e+00 : f32
    %99 = vector.broadcast %cst_70 : f32 to vector<16x384xf32>
    %100 = arith.maximumf %98, %99 : vector<16x384xf32>
    %c19_i32_71 = arith.constant 19 : i32
    %101 = tpu.dynamic_rotate %100 by %c19_i32_71 dim 1 : vector<16x384xf32>, i32 -> vector<16x384xf32>
    %102 = vector.broadcast %0 : vector<1x384xf32> to vector<16x384xf32>
    %103 = arith.mulf %101, %102 : vector<16x384xf32>
    %c383_i32_72 = arith.constant 383 : i32
    %104 = tpu.dynamic_rotate %103 by %c383_i32_72 dim 1 : vector<16x384xf32>, i32 -> vector<16x384xf32>
    %c382_i32_73 = arith.constant 382 : i32
    %105 = tpu.dynamic_rotate %103 by %c382_i32_73 dim 1 : vector<16x384xf32>, i32 -> vector<16x384xf32>
    %c366_i32_74 = arith.constant 366 : i32
    %106 = tpu.dynamic_rotate %103 by %c366_i32_74 dim 1 : vector<16x384xf32>, i32 -> vector<16x384xf32>
    %c365_i32_75 = arith.constant 365 : i32
    %107 = tpu.dynamic_rotate %103 by %c365_i32_75 dim 1 : vector<16x384xf32>, i32 -> vector<16x384xf32>
    %c364_i32_76 = arith.constant 364 : i32
    %108 = tpu.dynamic_rotate %103 by %c364_i32_76 dim 1 : vector<16x384xf32>, i32 -> vector<16x384xf32>
    %c348_i32_77 = arith.constant 348 : i32
    %109 = tpu.dynamic_rotate %103 by %c348_i32_77 dim 1 : vector<16x384xf32>, i32 -> vector<16x384xf32>
    %c347_i32_78 = arith.constant 347 : i32
    %110 = tpu.dynamic_rotate %103 by %c347_i32_78 dim 1 : vector<16x384xf32>, i32 -> vector<16x384xf32>
    %c346_i32_79 = arith.constant 346 : i32
    %111 = tpu.dynamic_rotate %103 by %c346_i32_79 dim 1 : vector<16x384xf32>, i32 -> vector<16x384xf32>
    %112 = tpu.concatenate %103, %104, %105, %106, %107, %108, %109, %110, %111 in 0 : vector<16x384xf32>, vector<16x384xf32>, vector<16x384xf32>, vector<16x384xf32>, vector<16x384xf32>, vector<16x384xf32>, vector<16x384xf32>, vector<16x384xf32>, vector<16x384xf32> -> vector<144x384xf32>
    %c0_80 = arith.constant 0 : index
    %c0_81 = arith.constant 0 : index
    %113 = vector.load %arg14[%c0_80, %c0_81] : memref<16x144xf32, #tpu.memory_space<vmem>>, vector<16x144xf32>
    %cst_82 = arith.constant dense<0.000000e+00> : vector<16x384xf32>
    %114 = tpu.matmul %113, %112, %cst_82 {dimension_numbers = #tpu.dot_dimension_numbers<[1], [0], [0], [1], [0, 0, 1, 1], [], []>} : vector<16x144xf32>, vector<144x384xf32>, vector<16x384xf32> -> vector<16x384xf32>
    %c0_83 = arith.constant 0 : index
    %c0_84 = arith.constant 0 : index
    %115 = vector.load %arg15[%c0_83, %c0_84] : memref<16x1xf32, #tpu.memory_space<vmem>>, vector<16x1xf32>
    %116 = vector.broadcast %115 : vector<16x1xf32> to vector<16x384xf32>
    %117 = arith.addf %114, %116 : vector<16x384xf32>
    %cst_85 = arith.constant 0.000000e+00 : f32
    %118 = vector.broadcast %cst_85 : f32 to vector<16x384xf32>
    %119 = arith.maximumf %117, %118 : vector<16x384xf32>
    %c365_i32_86 = arith.constant 365 : i32
    %120 = tpu.dynamic_rotate %2 by %c365_i32_86 dim 1 : vector<8x384xf32>, i32 -> vector<8x384xf32>
    %121 = tpu.concatenate %119, %120 in 0 : vector<16x384xf32>, vector<8x384xf32> -> vector<24x384xf32>
    %c0_87 = arith.constant 0 : index
    %c0_88 = arith.constant 0 : index
    %122 = vector.load %arg16[%c0_87, %c0_88] : memref<3x24xf32, #tpu.memory_space<vmem>>, vector<3x24xf32>
    %cst_89 = arith.constant dense<0.000000e+00> : vector<3x384xf32>
    %123 = tpu.matmul %122, %121, %cst_89 {dimension_numbers = #tpu.dot_dimension_numbers<[1], [0], [0], [1], [0, 0, 1, 1], [], []>} : vector<3x24xf32>, vector<24x384xf32>, vector<3x384xf32> -> vector<3x384xf32>
    %c0_90 = arith.constant 0 : index
    %c0_91 = arith.constant 0 : index
    %124 = vector.load %arg17[%c0_90, %c0_91] : memref<3x1xf32, #tpu.memory_space<vmem>>, vector<3x1xf32>
    %125 = vector.broadcast %124 : vector<3x1xf32> to vector<3x384xf32>
    %126 = arith.addf %123, %125 : vector<3x384xf32>
    %c0_92 = arith.constant 0 : index
    %c0_93 = arith.constant 0 : index
    %c0_94 = arith.constant 0 : index
    %127 = vector.load %arg18[%c0_92, %c0_93, %c0_94] : memref<1x3x384xf32, #tpu.memory_space<vmem>>, vector<1x3x384xf32>
    %128 = vector.shape_cast %127 : vector<1x3x384xf32> to vector<3x384xf32>
    %129 = vector.shape_cast %126 : vector<3x384xf32> to vector<1x3x384xf32>
    tpu.vector_store %arg18[%c0_92, %c0_93, %c0_94], %129 {strides = array<i32>} : memref<1x3x384xf32, #tpu.memory_space<vmem>>, vector<1x3x384xf32>,
    return
  }
  func.func @transform_0(%arg0: i32) -> (i32, i32, i32) {
    %c0_i32 = arith.constant 0 : i32
    %c0_i32_0 = arith.constant 0 : i32
    %c0_i32_1 = arith.constant 0 : i32
    return %arg0, %c0_i32, %c0_i32_0 : i32, i32, i32
  }
  func.func @transform_1(%arg0: i32) -> (i32, i32, i32) {
    %c0_i32 = arith.constant 0 : i32
    %c0_i32_0 = arith.constant 0 : i32
    %c0_i32_1 = arith.constant 0 : i32
    return %arg0, %c0_i32, %c0_i32_0 : i32, i32, i32
  }
  func.func @transform_2(%arg0: i32) -> (i32, i32) {
    %c0_i32 = arith.constant 0 : i32
    %c0_i32_0 = arith.constant 0 : i32
    %c0_i32_1 = arith.constant 0 : i32
    return %c0_i32, %c0_i32_0 : i32, i32
  }
  func.func @transform_3(%arg0: i32) -> (i32, i32) {
    %c0_i32 = arith.constant 0 : i32
    %c0_i32_0 = arith.constant 0 : i32
    %c0_i32_1 = arith.constant 0 : i32
    return %c0_i32, %c0_i32_0 : i32, i32
  }
  func.func @transform_4(%arg0: i32) -> (i32, i32) {
    %c0_i32 = arith.constant 0 : i32
    %c0_i32_0 = arith.constant 0 : i32
    %c0_i32_1 = arith.constant 0 : i32
    return %c0_i32, %c0_i32_0 : i32, i32
  }
  func.func @transform_5(%arg0: i32) -> (i32, i32) {
    %c0_i32 = arith.constant 0 : i32
    %c0_i32_0 = arith.constant 0 : i32
    %c0_i32_1 = arith.constant 0 : i32
    return %c0_i32, %c0_i32_0 : i32, i32
  }
  func.func @transform_6(%arg0: i32) -> (i32, i32) {
    %c0_i32 = arith.constant 0 : i32
    %c0_i32_0 = arith.constant 0 : i32
    %c0_i32_1 = arith.constant 0 : i32
    return %c0_i32, %c0_i32_0 : i32, i32
  }
  func.func @transform_7(%arg0: i32) -> (i32, i32) {
    %c0_i32 = arith.constant 0 : i32
    %c0_i32_0 = arith.constant 0 : i32
    %c0_i32_1 = arith.constant 0 : i32
    return %c0_i32, %c0_i32_0 : i32, i32
  }
  func.func @transform_8(%arg0: i32) -> (i32, i32) {
    %c0_i32 = arith.constant 0 : i32
    %c0_i32_0 = arith.constant 0 : i32
    %c0_i32_1 = arith.constant 0 : i32
    return %c0_i32, %c0_i32_0 : i32, i32
  }
  func.func @transform_9(%arg0: i32) -> (i32, i32) {
    %c0_i32 = arith.constant 0 : i32
    %c0_i32_0 = arith.constant 0 : i32
    %c0_i32_1 = arith.constant 0 : i32
    return %c0_i32, %c0_i32_0 : i32, i32
  }
  func.func @transform_10(%arg0: i32) -> (i32, i32) {
    %c0_i32 = arith.constant 0 : i32
    %c0_i32_0 = arith.constant 0 : i32
    %c0_i32_1 = arith.constant 0 : i32
    return %c0_i32, %c0_i32_0 : i32, i32
  }
  func.func @transform_11(%arg0: i32) -> (i32, i32) {
    %c0_i32 = arith.constant 0 : i32
    %c0_i32_0 = arith.constant 0 : i32
    %c0_i32_1 = arith.constant 0 : i32
    return %c0_i32, %c0_i32_0 : i32, i32
  }
  func.func @transform_12(%arg0: i32) -> (i32, i32) {
    %c0_i32 = arith.constant 0 : i32
    %c0_i32_0 = arith.constant 0 : i32
    %c0_i32_1 = arith.constant 0 : i32
    return %c0_i32, %c0_i32_0 : i32, i32
  }
  func.func @transform_13(%arg0: i32) -> (i32, i32) {
    %c0_i32 = arith.constant 0 : i32
    %c0_i32_0 = arith.constant 0 : i32
    %c0_i32_1 = arith.constant 0 : i32
    return %c0_i32, %c0_i32_0 : i32, i32
  }
  func.func @transform_14(%arg0: i32) -> (i32, i32) {
    %c0_i32 = arith.constant 0 : i32
    %c0_i32_0 = arith.constant 0 : i32
    %c0_i32_1 = arith.constant 0 : i32
    return %c0_i32, %c0_i32_0 : i32, i32
  }
  func.func @transform_15(%arg0: i32) -> (i32, i32) {
    %c0_i32 = arith.constant 0 : i32
    %c0_i32_0 = arith.constant 0 : i32
    %c0_i32_1 = arith.constant 0 : i32
    return %c0_i32, %c0_i32_0 : i32, i32
  }
  func.func @transform_16(%arg0: i32) -> (i32, i32) {
    %c0_i32 = arith.constant 0 : i32
    %c0_i32_0 = arith.constant 0 : i32
    %c0_i32_1 = arith.constant 0 : i32
    return %c0_i32, %c0_i32_0 : i32, i32
  }
  func.func @transform_17(%arg0: i32) -> (i32, i32, i32) {
    %c0_i32 = arith.constant 0 : i32
    %c0_i32_0 = arith.constant 0 : i32
    %c0_i32_1 = arith.constant 0 : i32
    return %arg0, %c0_i32, %c0_i32_0 : i32, i32, i32
  }
}

</mosaic_0001>

<llo_original>
// kernel: encoder_forward.1
$region0: #{encoder_forward.1}
  #allocation0 [shape = 'u32[]', space=smem, size = 0x4, offset = 0x4, fixed_abs, tag = 'smem constant byte address 0x4 - core index']
  #allocation1 [shape = 'u32[72,128]{1,0:T(1,128)}', space=vmem, size = 0x9000, scoped, tag = 'internal scratch']
  %s0 = inlined_call_operand.vmem [shape: f32[2,8,384], index: 0, kind: input, shape index: {}]
  %s1 = inlined_call_operand.vmem [shape: f32[2,8,1], index: 1, kind: input, shape index: {}]
  %s2 = inlined_call_operand.vmem [shape: f32[1,384], index: 2, kind: input, shape index: {}]
  %s3 = inlined_call_operand.vmem [shape: f32[16,72], index: 3, kind: input, shape index: {}]
  %s4 = inlined_call_operand.vmem [shape: f32[16,1], index: 4, kind: input, shape index: {}]
  %s5 = inlined_call_operand.vmem [shape: f32[16,144], index: 5, kind: input, shape index: {}]
  %s6 = inlined_call_operand.vmem [shape: f32[16,1], index: 6, kind: input, shape index: {}]
  %s7 = inlined_call_operand.vmem [shape: f32[16,144], index: 7, kind: input, shape index: {}]
  %s8 = inlined_call_operand.vmem [shape: f32[16,1], index: 8, kind: input, shape index: {}]
  %s9 = inlined_call_operand.vmem [shape: f32[16,144], index: 9, kind: input, shape index: {}]
  %s10 = inlined_call_operand.vmem [shape: f32[16,1], index: 10, kind: input, shape index: {}]
  %s11 = inlined_call_operand.vmem [shape: f32[16,216], index: 11, kind: input, shape index: {}]
  %s12 = inlined_call_operand.vmem [shape: f32[16,1], index: 12, kind: input, shape index: {}]
  %s13 = inlined_call_operand.vmem [shape: f32[16,144], index: 13, kind: input, shape index: {}]
  %s14 = inlined_call_operand.vmem [shape: f32[16,1], index: 14, kind: input, shape index: {}]
  %s15 = inlined_call_operand.vmem [shape: f32[3,24], index: 15, kind: input, shape index: {}]
  %s16 = inlined_call_operand.vmem [shape: f32[3,1], index: 16, kind: input, shape index: {}]
  %s17 = inlined_call_operand.vmem [shape: f32[2,3,384], index: 17, kind: output, shape index: {}]
  %s18 = sld [smem:[#allocation0]]
  $region101: #{encoder_forward.1} parent=0
    _
  %s20 = ssub.s32 1, %s18
  %s21 = scalar_select 0, %s20, %s18
  loop: start=0, step=1, limit=4
  $region2: #{encoder_forward.1} parent=0 // loop_pre_header
    _
  $region3: #{encoder_forward.1} parent=0 // loop_header
    %s23 = sphi 0, %s27
    %p24 = scmp.ge.s32.totalorder %s23, 4
    %s33 = sphi 0, %s35
    %s36 = sphi 0, %s33
    %s37 = sphi 0, %s36
    %s53 = sphi 0, %s37
    %s59 = sphi 0, %s61
    %s62 = sphi 0, %s59
    %s63 = sphi 0, %s62
    %s79 = sphi 0, %s63
    %s83 = sphi 0, %s83
    %s85 = sphi 0, %s83
    %s86 = sphi 0, %s85
    %s100 = sphi 0, %s86
    %s104 = sphi 0, %s104
    %s106 = sphi 0, %s104
    %s107 = sphi 0, %s106
    %s121 = sphi 0, %s107
    %s125 = sphi 0, %s125
    %s127 = sphi 0, %s125
    %s128 = sphi 0, %s127
    %s142 = sphi 0, %s128
    %s146 = sphi 0, %s146
    %s148 = sphi 0, %s146
    %s149 = sphi 0, %s148
    %s163 = sphi 0, %s149
    %s167 = sphi 0, %s167
    %s169 = sphi 0, %s167
    %s170 = sphi 0, %s169
    %s184 = sphi 0, %s170
    %s188 = sphi 0, %s188
    %s190 = sphi 0, %s188
    %s191 = sphi 0, %s190
    %s205 = sphi 0, %s191
    %s209 = sphi 0, %s209
    %s211 = sphi 0, %s209
    %s212 = sphi 0, %s211
    %s226 = sphi 0, %s212
    %s230 = sphi 0, %s230
    %s232 = sphi 0, %s230
    %s233 = sphi 0, %s232
    %s247 = sphi 0, %s233
    %s251 = sphi 0, %s251
    %s253 = sphi 0, %s251
    %s254 = sphi 0, %s253
    %s268 = sphi 0, %s254
    %s272 = sphi 0, %s272
    %s274 = sphi 0, %s272
    %s275 = sphi 0, %s274
    %s289 = sphi 0, %s275
    %s293 = sphi 0, %s293
    %s295 = sphi 0, %s293
    %s296 = sphi 0, %s295
    %s310 = sphi 0, %s296
    %s314 = sphi 0, %s314
    %s316 = sphi 0, %s314
    %s317 = sphi 0, %s316
    %s331 = sphi 0, %s317
    %s335 = sphi 0, %s335
    %s337 = sphi 0, %s335
    %s338 = sphi 0, %s337
    %s352 = sphi 0, %s338
    %s356 = sphi 0, %s356
    %s358 = sphi 0, %s356
    %s359 = sphi 0, %s358
    %s373 = sphi 0, %s359
    %s377 = sphi 0, %s377
    %s379 = sphi 0, %s377
    %s380 = sphi 0, %s379
    %s394 = sphi 0, %s380
    %s400 = sphi 0, %s402
    %s403 = sphi 0, %s400
    %s404 = sphi 0, %s403
    %s420 = sphi 0, %s404
  $region4: #{encoder_forward.1} parent=0 // loop_header_branch
    %26 = sbr.rel (%p24) target = $region8
  $region5: #{encoder_forward.1} parent=0 // loop_body
    %s28 = ssub.s32 %s23, 1
    %s29 = ssub.s32 %s23, 2
    %s30 = sadd.s32 %s23, 1
    %s31 = ssub.s32 %s23, %s30
    %p32 = scmp.eq.s32.totalorder %s31, 0
    %s34 = sadd.s32 %s33, 1
    %s35 = scalar_select %p32, %s33, %s34
    %p38 = pneg %p32
    %p39 = scmp.eq.s32.totalorder %s23, 1
    %p40 = por %p38, %p39
    %p41 = scmp.ne.s32.totalorder %s33, %s36
    %p42 = scmp.eq.s32.totalorder %s23, 0
    %p43 = por %p41, %p42
    %p44 = scmp.ne.s32.totalorder %s33, %s36
    %p45 = scmp.eq.s32.totalorder %s28, 1
    %p46 = por %p44, %p45
    %p47 = scmp.ne.s32.totalorder %s36, %s37
    %p48 = scmp.eq.s32.totalorder %s28, 0
    %p49 = por %p47, %p48
    %p50 = scmp.ne.s32.totalorder %s36, %s37
    %p51 = scmp.eq.s32.totalorder %s29, 1
    %p52 = por %p50, %p51
    %p54 = scmp.ne.s32.totalorder %s37, %s53
    %p55 = scmp.eq.s32.totalorder %s29, 0
    %p56 = por %p54, %p55
    %s57 = ssub.s32 %s23, %s30
    %p58 = scmp.eq.s32.totalorder %s57, 0
    %s60 = sadd.s32 %s59, 1
    %s61 = scalar_select %p58, %s59, %s60
    %p64 = pneg %p58
    %p65 = scmp.eq.s32.totalorder %s23, 1
    %p66 = por %p64, %p65
    %p67 = scmp.ne.s32.totalorder %s59, %s62
    %p68 = scmp.eq.s32.totalorder %s23, 0
    %p69 = por %p67, %p68
    %p70 = scmp.ne.s32.totalorder %s59, %s62
    %p71 = scmp.eq.s32.totalorder %s28, 1
    %p72 = por %p70, %p71
    %p73 = scmp.ne.s32.totalorder %s62, %s63
    %p74 = scmp.eq.s32.totalorder %s28, 0
    %p75 = por %p73, %p74
    %p76 = scmp.ne.s32.totalorder %s62, %s63
    %p77 = scmp.eq.s32.totalorder %s29, 1
    %p78 = por %p76, %p77
    %p80 = scmp.ne.s32.totalorder %s63, %s79
    %p81 = scmp.eq.s32.totalorder %s29, 0
    %p82 = por %p80, %p81
    %s84 = sadd.s32 %s83, 1
    %p87 = scmp.eq.s32.totalorder %s23, 1
    %p88 = scmp.ne.s32.totalorder %s83, %s85
    %p89 = scmp.eq.s32.totalorder %s23, 0
    %p90 = por %p88, %p89
    %p91 = scmp.ne.s32.totalorder %s83, %s85
    %p92 = scmp.eq.s32.totalorder %s28, 1
    %p93 = por %p91, %p92
    %p94 = scmp.ne.s32.totalorder %s85, %s86
    %p95 = scmp.eq.s32.totalorder %s28, 0
    %p96 = por %p94, %p95
    %p97 = scmp.ne.s32.totalorder %s85, %s86
    %p98 = scmp.eq.s32.totalorder %s29, 1
    %p99 = por %p97, %p98
    %p101 = scmp.ne.s32.totalorder %s86, %s100
    %p102 = scmp.eq.s32.totalorder %s29, 0
    %p103 = por %p101, %p102
    %s105 = sadd.s32 %s104, 1
    %p108 = scmp.eq.s32.totalorder %s23, 1
    %p109 = scmp.ne.s32.totalorder %s104, %s106
    %p110 = scmp.eq.s32.totalorder %s23, 0
    %p111 = por %p109, %p110
    %p112 = scmp.ne.s32.totalorder %s104, %s106
    %p113 = scmp.eq.s32.totalorder %s28, 1
    %p114 = por %p112, %p113
    %p115 = scmp.ne.s32.totalorder %s106, %s107
    %p116 = scmp.eq.s32.totalorder %s28, 0
    %p117 = por %p115, %p116
    %p118 = scmp.ne.s32.totalorder %s106, %s107
    %p119 = scmp.eq.s32.totalorder %s29, 1
    %p120 = por %p118, %p119
    %p122 = scmp.ne.s32.totalorder %s107, %s121
    %p123 = scmp.eq.s32.totalorder %s29, 0
    %p124 = por %p122, %p123
    %s126 = sadd.s32 %s125, 1
    %p129 = scmp.eq.s32.totalorder %s23, 1
    %p130 = scmp.ne.s32.totalorder %s125, %s127
    %p131 = scmp.eq.s32.totalorder %s23, 0
    %p132 = por %p130, %p131
    %p133 = scmp.ne.s32.totalorder %s125, %s127
    %p134 = scmp.eq.s32.totalorder %s28, 1
    %p135 = por %p133, %p134
    %p136 = scmp.ne.s32.totalorder %s127, %s128
    %p137 = scmp.eq.s32.totalorder %s28, 0
    %p138 = por %p136, %p137
    %p139 = scmp.ne.s32.totalorder %s127, %s128
    %p140 = scmp.eq.s32.totalorder %s29, 1
    %p141 = por %p139, %p140
    %p143 = scmp.ne.s32.totalorder %s128, %s142
    %p144 = scmp.eq.s32.totalorder %s29, 0
    %p145 = por %p143, %p144
    %s147 = sadd.s32 %s146, 1
    %p150 = scmp.eq.s32.totalorder %s23, 1
    %p151 = scmp.ne.s32.totalorder %s146, %s148
    %p152 = scmp.eq.s32.totalorder %s23, 0
    %p153 = por %p151, %p152
    %p154 = scmp.ne.s32.totalorder %s146, %s148
    %p155 = scmp.eq.s32.totalorder %s28, 1
    %p156 = por %p154, %p155
    %p157 = scmp.ne.s32.totalorder %s148, %s149
    %p158 = scmp.eq.s32.totalorder %s28, 0
    %p159 = por %p157, %p158
    %p160 = scmp.ne.s32.totalorder %s148, %s149
    %p161 = scmp.eq.s32.totalorder %s29, 1
    %p162 = por %p160, %p161
    %p164 = scmp.ne.s32.totalorder %s149, %s163
    %p165 = scmp.eq.s32.totalorder %s29, 0
    %p166 = por %p164, %p165
    %s168 = sadd.s32 %s167, 1
    %p171 = scmp.eq.s32.totalorder %s23, 1
    %p172 = scmp.ne.s32.totalorder %s167, %s169
    %p173 = scmp.eq.s32.totalorder %s23, 0
    %p174 = por %p172, %p173
    %p175 = scmp.ne.s32.totalorder %s167, %s169
    %p176 = scmp.eq.s32.totalorder %s28, 1
    %p177 = por %p175, %p176
    %p178 = scmp.ne.s32.totalorder %s169, %s170
    %p179 = scmp.eq.s32.totalorder %s28, 0
    %p180 = por %p178, %p179
    %p181 = scmp.ne.s32.totalorder %s169, %s170
    %p182 = scmp.eq.s32.totalorder %s29, 1
    %p183 = por %p181, %p182
    %p185 = scmp.ne.s32.totalorder %s170, %s184
    %p186 = scmp.eq.s32.totalorder %s29, 0
    %p187 = por %p185, %p186
    %s189 = sadd.s32 %s188, 1
    %p192 = scmp.eq.s32.totalorder %s23, 1
    %p193 = scmp.ne.s32.totalorder %s188, %s190
    %p194 = scmp.eq.s32.totalorder %s23, 0
    %p195 = por %p193, %p194
    %p196 = scmp.ne.s32.totalorder %s188, %s190
    %p197 = scmp.eq.s32.totalorder %s28, 1
    %p198 = por %p196, %p197
    %p199 = scmp.ne.s32.totalorder %s190, %s191
    %p200 = scmp.eq.s32.totalorder %s28, 0
    %p201 = por %p199, %p200
    %p202 = scmp.ne.s32.totalorder %s190, %s191
    %p203 = scmp.eq.s32.totalorder %s29, 1
    %p204 = por %p202, %p203
    %p206 = scmp.ne.s32.totalorder %s191, %s205
    %p207 = scmp.eq.s32.totalorder %s29, 0
    %p208 = por %p206, %p207
    %s210 = sadd.s32 %s209, 1
    %p213 = scmp.eq.s32.totalorder %s23, 1
    %p214 = scmp.ne.s32.totalorder %s209, %s211
    %p215 = scmp.eq.s32.totalorder %s23, 0
    %p216 = por %p214, %p215
    %p217 = scmp.ne.s32.totalorder %s209, %s211
    %p218 = scmp.eq.s32.totalorder %s28, 1
    %p219 = por %p217, %p218
    %p220 = scmp.ne.s32.totalorder %s211, %s212
    %p221 = scmp.eq.s32.totalorder %s28, 0
    %p222 = por %p220, %p221
    %p223 = scmp.ne.s32.totalorder %s211, %s212
    %p224 = scmp.eq.s32.totalorder %s29, 1
    %p225 = por %p223, %p224
    %p227 = scmp.ne.s32.totalorder %s212, %s226
    %p228 = scmp.eq.s32.totalorder %s29, 0
    %p229 = por %p227, %p228
    %s231 = sadd.s32 %s230, 1
    %p234 = scmp.eq.s32.totalorder %s23, 1
    %p235 = scmp.ne.s32.totalorder %s230, %s232
    %p236 = scmp.eq.s32.totalorder %s23, 0
    %p237 = por %p235, %p236
    %p238 = scmp.ne.s32.totalorder %s230, %s232
    %p239 = scmp.eq.s32.totalorder %s28, 1
    %p240 = por %p238, %p239
    %p241 = scmp.ne.s32.totalorder %s232, %s233
    %p242 = scmp.eq.s32.totalorder %s28, 0
    %p243 = por %p241, %p242
    %p244 = scmp.ne.s32.totalorder %s232, %s233
    %p245 = scmp.eq.s32.totalorder %s29, 1
    %p246 = por %p244, %p245
    %p248 = scmp.ne.s32.totalorder %s233, %s247
    %p249 = scmp.eq.s32.totalorder %s29, 0
    %p250 = por %p248, %p249
    %s252 = sadd.s32 %s251, 1
    %p255 = scmp.eq.s32.totalorder %s23, 1
    %p256 = scmp.ne.s32.totalorder %s251, %s253
    %p257 = scmp.eq.s32.totalorder %s23, 0
    %p258 = por %p256, %p257
    %p259 = scmp.ne.s32.totalorder %s251, %s253
    %p260 = scmp.eq.s32.totalorder %s28, 1
    %p261 = por %p259, %p260
    %p262 = scmp.ne.s32.totalorder %s253, %s254
    %p263 = scmp.eq.s32.totalorder %s28, 0
    %p264 = por %p262, %p263
    %p265 = scmp.ne.s32.totalorder %s253, %s254
    %p266 = scmp.eq.s32.totalorder %s29, 1
    %p267 = por %p265, %p266
    %p269 = scmp.ne.s32.totalorder %s254, %s268
    %p270 = scmp.eq.s32.totalorder %s29, 0
    %p271 = por %p269, %p270
    %s273 = sadd.s32 %s272, 1
    %p276 = scmp.eq.s32.totalorder %s23, 1
    %p277 = scmp.ne.s32.totalorder %s272, %s274
    %p278 = scmp.eq.s32.totalorder %s23, 0
    %p279 = por %p277, %p278
    %p280 = scmp.ne.s32.totalorder %s272, %s274
    %p281 = scmp.eq.s32.totalorder %s28, 1
    %p282 = por %p280, %p281
    %p283 = scmp.ne.s32.totalorder %s274, %s275
    %p284 = scmp.eq.s32.totalorder %s28, 0
    %p285 = por %p283, %p284
    %p286 = scmp.ne.s32.totalorder %s274, %s275
    %p287 = scmp.eq.s32.totalorder %s29, 1
    %p288 = por %p286, %p287
    %p290 = scmp.ne.s32.totalorder %s275, %s289
    %p291 = scmp.eq.s32.totalorder %s29, 0
    %p292 = por %p290, %p291
    %s294 = sadd.s32 %s293, 1
    %p297 = scmp.eq.s32.totalorder %s23, 1
    %p298 = scmp.ne.s32.totalorder %s293, %s295
    %p299 = scmp.eq.s32.totalorder %s23, 0
    %p300 = por %p298, %p299
    %p301 = scmp.ne.s32.totalorder %s293, %s295
    %p302 = scmp.eq.s32.totalorder %s28, 1
    %p303 = por %p301, %p302
    %p304 = scmp.ne.s32.totalorder %s295, %s296
    %p305 = scmp.eq.s32.totalorder %s28, 0
    %p306 = por %p304, %p305
    %p307 = scmp.ne.s32.totalorder %s295, %s296
    %p308 = scmp.eq.s32.totalorder %s29, 1
    %p309 = por %p307, %p308
    %p311 = scmp.ne.s32.totalorder %s296, %s310
    %p312 = scmp.eq.s32.totalorder %s29, 0
    %p313 = por %p311, %p312
    %s315 = sadd.s32 %s314, 1
    %p318 = scmp.eq.s32.totalorder %s23, 1
    %p319 = scmp.ne.s32.totalorder %s314, %s316
    %p320 = scmp.eq.s32.totalorder %s23, 0
    %p321 = por %p319, %p320
    %p322 = scmp.ne.s32.totalorder %s314, %s316
    %p323 = scmp.eq.s32.totalorder %s28, 1
    %p324 = por %p322, %p323
    %p325 = scmp.ne.s32.totalorder %s316, %s317
    %p326 = scmp.eq.s32.totalorder %s28, 0
    %p327 = por %p325, %p326
    %p328 = scmp.ne.s32.totalorder %s316, %s317
    %p329 = scmp.eq.s32.totalorder %s29, 1
    %p330 = por %p328, %p329
    %p332 = scmp.ne.s32.totalorder %s317, %s331
    %p333 = scmp.eq.s32.totalorder %s29, 0
    %p334 = por %p332, %p333
    %s336 = sadd.s32 %s335, 1
    %p339 = scmp.eq.s32.totalorder %s23, 1
    %p340 = scmp.ne.s32.totalorder %s335, %s337
    %p341 = scmp.eq.s32.totalorder %s23, 0
    %p342 = por %p340, %p341
    %p343 = scmp.ne.s32.totalorder %s335, %s337
    %p344 = scmp.eq.s32.totalorder %s28, 1
    %p345 = por %p343, %p344
    %p346 = scmp.ne.s32.totalorder %s337, %s338
    %p347 = scmp.eq.s32.totalorder %s28, 0
    %p348 = por %p346, %p347
    %p349 = scmp.ne.s32.totalorder %s337, %s338
    %p350 = scmp.eq.s32.totalorder %s29, 1
    %p351 = por %p349, %p350
    %p353 = scmp.ne.s32.totalorder %s338, %s352
    %p354 = scmp.eq.s32.totalorder %s29, 0
    %p355 = por %p353, %p354
    %s357 = sadd.s32 %s356, 1
    %p360 = scmp.eq.s32.totalorder %s23, 1
    %p361 = scmp.ne.s32.totalorder %s356, %s358
    %p362 = scmp.eq.s32.totalorder %s23, 0
    %p363 = por %p361, %p362
    %p364 = scmp.ne.s32.totalorder %s356, %s358
    %p365 = scmp.eq.s32.totalorder %s28, 1
    %p366 = por %p364, %p365
    %p367 = scmp.ne.s32.totalorder %s358, %s359
    %p368 = scmp.eq.s32.totalorder %s28, 0
    %p369 = por %p367, %p368
    %p370 = scmp.ne.s32.totalorder %s358, %s359
    %p371 = scmp.eq.s32.totalorder %s29, 1
    %p372 = por %p370, %p371
    %p374 = scmp.ne.s32.totalorder %s359, %s373
    %p375 = scmp.eq.s32.totalorder %s29, 0
    %p376 = por %p374, %p375
    %s378 = sadd.s32 %s377, 1
    %p381 = scmp.eq.s32.totalorder %s23, 1
    %p382 = scmp.ne.s32.totalorder %s377, %s379
    %p383 = scmp.eq.s32.totalorder %s23, 0
    %p384 = por %p382, %p383
    %p385 = scmp.ne.s32.totalorder %s377, %s379
    %p386 = scmp.eq.s32.totalorder %s28, 1
    %p387 = por %p385, %p386
    %p388 = scmp.ne.s32.totalorder %s379, %s380
    %p389 = scmp.eq.s32.totalorder %s28, 0
    %p390 = por %p388, %p389
    %p391 = scmp.ne.s32.totalorder %s379, %s380
    %p392 = scmp.eq.s32.totalorder %s29, 1
    %p393 = por %p391, %p392
    %p395 = scmp.ne.s32.totalorder %s380, %s394
    %p396 = scmp.eq.s32.totalorder %s29, 0
    %p397 = por %p395, %p396
    %s398 = ssub.s32 %s23, %s30
    %p399 = scmp.eq.s32.totalorder %s398, 0
    %s401 = sadd.s32 %s400, 1
    %s402 = scalar_select %p399, %s400, %s401
    %p405 = pneg %p399
    %p406 = scmp.eq.s32.totalorder %s23, 1
    %p407 = por %p405, %p406
    %p408 = scmp.ne.s32.totalorder %s400, %s403
    %p409 = scmp.eq.s32.totalorder %s23, 0
    %p410 = por %p408, %p409
    %p411 = scmp.ne.s32.totalorder %s400, %s403
    %p412 = scmp.eq.s32.totalorder %s28, 1
    %p413 = por %p411, %p412
    %p414 = scmp.ne.s32.totalorder %s403, %s404
    %p415 = scmp.eq.s32.totalorder %s28, 0
    %p416 = por %p414, %p415
    %p417 = scmp.ne.s32.totalorder %s403, %s404
    %p418 = scmp.eq.s32.totalorder %s29, 1
    %p419 = por %p417, %p418
    %p421 = scmp.ne.s32.totalorder %s404, %s420
    %p422 = scmp.eq.s32.totalorder %s29, 0
    %p423 = por %p421, %p422
    %p424 = scmp.le.s32.totalorder 1, %s23
    %p425 = scmp.lt.s32.totalorder %s23, 3
    %p426 = pnand %p424, %p425
    %p427 = pneg %p426
    // Predicated region
    $region9: #{encoder_forward.1} parent=5 // pred_check
      _
    $region10: #{encoder_forward.1} parent=5 // pred_check_branch
      %429 = sbr.rel (%p426) target = $region12
    $region11: #{encoder_forward.1} parent=5 // pred_region
      %s430 = ssub.s32 %s23, 1
      // Predicated region
      $region13: #{encoder_forward.1} parent=11 // pred_check
        %p431 = pneg %p96
      $region14: #{encoder_forward.1} parent=11 // pred_check_branch
        %433 = sbr.rel (%p431) target = $region16
      $region15: #{encoder_forward.1} parent=11 // pred_region
        _
      $region16: #{encoder_forward.1} parent=11 // pred_fallthru
        _
      // Predicated region
      $region17: #{encoder_forward.1} parent=11 // pred_check
        %p434 = pneg %p117
      $region18: #{encoder_forward.1} parent=11 // pred_check_branch
        %436 = sbr.rel (%p434) target = $region20
      $region19: #{encoder_forward.1} parent=11 // pred_region
        _
      $region20: #{encoder_forward.1} parent=11 // pred_fallthru
        _
      // Predicated region
      $region21: #{encoder_forward.1} parent=11 // pred_check
        %p437 = pneg %p138
      $region22: #{encoder_forward.1} parent=11 // pred_check_branch
        %439 = sbr.rel (%p437) target = $region24
      $region23: #{encoder_forward.1} parent=11 // pred_region
        _
      $region24: #{encoder_forward.1} parent=11 // pred_fallthru
        _
      // Predicated region
      $region25: #{encoder_forward.1} parent=11 // pred_check
        %p440 = pneg %p159
      $region26: #{encoder_forward.1} parent=11 // pred_check_branch
        %442 = sbr.rel (%p440) target = $region28
      $region27: #{encoder_forward.1} parent=11 // pred_region
        _
      $region28: #{encoder_forward.1} parent=11 // pred_fallthru
        _
      // Predicated region
      $region29: #{encoder_forward.1} parent=11 // pred_check
        %p443 = pneg %p180
      $region30: #{encoder_forward.1} parent=11 // pred_check_branch
        %445 = sbr.rel (%p443) target = $region32
      $region31: #{encoder_forward.1} parent=11 // pred_region
        _
      $region32: #{encoder_forward.1} parent=11 // pred_fallthru
        _
      // Predicated region
      $region33: #{encoder_forward.1} parent=11 // pred_check
        %p446 = pneg %p201
      $region34: #{encoder_forward.1} parent=11 // pred_check_branch
        %448 = sbr.rel (%p446) target = $region36
      $region35: #{encoder_forward.1} parent=11 // pred_region
        _
      $region36: #{encoder_forward.1} parent=11 // pred_fallthru
        _
      // Predicated region
      $region37: #{encoder_forward.1} parent=11 // pred_check
        %p449 = pneg %p222
      $region38: #{encoder_forward.1} parent=11 // pred_check_branch
        %451 = sbr.rel (%p449) target = $region40
      $region39: #{encoder_forward.1} parent=11 // pred_region
        _
      $region40: #{encoder_forward.1} parent=11 // pred_fallthru
        _
      // Predicated region
      $region41: #{encoder_forward.1} parent=11 // pred_check
        %p452 = pneg %p243
      $region42: #{encoder_forward.1} parent=11 // pred_check_branch
        %454 = sbr.rel (%p452) target = $region44
      $region43: #{encoder_forward.1} parent=11 // pred_region
        _
      $region44: #{encoder_forward.1} parent=11 // pred_fallthru
        _
      // Predicated region
      $region45: #{encoder_forward.1} parent=11 // pred_check
        %p455 = pneg %p264
      $region46: #{encoder_forward.1} parent=11 // pred_check_branch
        %457 = sbr.rel (%p455) target = $region48
      $region47: #{encoder_forward.1} parent=11 // pred_region
        _
      $region48: #{encoder_forward.1} parent=11 // pred_fallthru
        _
      // Predicated region
      $region49: #{encoder_forward.1} parent=11 // pred_check
        %p458 = pneg %p285
      $region50: #{encoder_forward.1} parent=11 // pred_check_branch
        %460 = sbr.rel (%p458) target = $region52
      $region51: #{encoder_forward.1} parent=11 // pred_region
        _
      $region52: #{encoder_forward.1} parent=11 // pred_fallthru
        _
      // Predicated region
      $region53: #{encoder_forward.1} parent=11 // pred_check
        %p461 = pneg %p306
      $region54: #{encoder_forward.1} parent=11 // pred_check_branch
        %463 = sbr.rel (%p461) target = $region56
      $region55: #{encoder_forward.1} parent=11 // pred_region
        _
      $region56: #{encoder_forward.1} parent=11 // pred_fallthru
        _
      // Predicated region
      $region57: #{encoder_forward.1} parent=11 // pred_check
        %p464 = pneg %p327
      $region58: #{encoder_forward.1} parent=11 // pred_check_branch
        %466 = sbr.rel (%p464) target = $region60
      $region59: #{encoder_forward.1} parent=11 // pred_region
        _
      $region60: #{encoder_forward.1} parent=11 // pred_fallthru
        _
      // Predicated region
      $region61: #{encoder_forward.1} parent=11 // pred_check
        %p467 = pneg %p348
      $region62: #{encoder_forward.1} parent=11 // pred_check_branch
        %469 = sbr.rel (%p467) target = $region64
      $region63: #{encoder_forward.1} parent=11 // pred_region
        _
      $region64: #{encoder_forward.1} parent=11 // pred_fallthru
        _
      // Predicated region
      $region65: #{encoder_forward.1} parent=11 // pred_check
        %p470 = pneg %p369
      $region66: #{encoder_forward.1} parent=11 // pred_check_branch
        %472 = sbr.rel (%p470) target = $region68
      $region67: #{encoder_forward.1} parent=11 // pred_region
        _
      $region68: #{encoder_forward.1} parent=11 // pred_fallthru
        _
      // Predicated region
      $region69: #{encoder_forward.1} parent=11 // pred_check
        %p473 = pneg %p390
      $region70: #{encoder_forward.1} parent=11 // pred_check_branch
        %475 = sbr.rel (%p473) target = $region72
      $region71: #{encoder_forward.1} parent=11 // pred_region
        _
      $region72: #{encoder_forward.1} parent=11 // pred_fallthru
        _
    $region12: #{encoder_forward.1} parent=5 // pred_fallthru
      _
    %p476 = scmp.lt.s32.totalorder %s23, 2
    // Predicated region
    $region73: #{encoder_forward.1} parent=5 // pred_check
      %p477 = pneg %p476
    $region74: #{encoder_forward.1} parent=5 // pred_check_branch
      %479 = sbr.rel (%p477) target = $region76
    $region75: #{encoder_forward.1} parent=5 // pred_region
      // Predicated region
      $region77: #{encoder_forward.1} parent=75 // pred_check
        %p480 = pneg %p43
      $region78: #{encoder_forward.1} parent=75 // pred_check_branch
        %482 = sbr.rel (%p480) target = $region80
      $region79: #{encoder_forward.1} parent=75 // pred_region
        %p483 = scmp.lt.s32.totalorder %s23, 1
        %s484 = scalar_select %p483, %s23, 1
        %s485 = smul.addr %s484, 3
        %s486 = smul.addr %s485, 8
        %s487 = scalar_lea.vmem %s0, %s486
      $region80: #{encoder_forward.1} parent=75 // pred_fallthru
        _
      // Predicated region
      $region81: #{encoder_forward.1} parent=75 // pred_check
        %p488 = pneg %p69
      $region82: #{encoder_forward.1} parent=75 // pred_check_branch
        %490 = sbr.rel (%p488) target = $region84
      $region83: #{encoder_forward.1} parent=75 // pred_region
        %p491 = scmp.lt.s32.totalorder %s23, 1
        %s492 = scalar_select %p491, %s23, 1
        %s493 = smul.addr %s492, 8
        %s494 = scalar_lea.vmem %s1, %s493
      $region84: #{encoder_forward.1} parent=75 // pred_fallthru
        _
    $region76: #{encoder_forward.1} parent=5 // pred_fallthru
      _
    %p495 = scmp.le.s32.totalorder 1, %s23
    %p496 = scmp.lt.s32.totalorder %s23, 3
    %p497 = pnand %p495, %p496
    %p498 = pneg %p497
    // Predicated region
    $region85: #{encoder_forward.1} parent=5 // pred_check
      _
    $region86: #{encoder_forward.1} parent=5 // pred_check_branch
      %500 = sbr.rel (%p497) target = $region88
    $region87: #{encoder_forward.1} parent=5 // pred_region
      %s501 = ssub.s32 %s23, 1
      %p502 = scmp.lt.s32.totalorder %s28, 1
      %s503 = scalar_select %p502, %s28, 1
      %s504 = smul.addr %s503, 3
      %s505 = smul.addr %s504, 8
      %s506 = scalar_lea.vmem %s0, %s505
      %p507 = pneg %p49
      %p508 = pneg %p46
      %p509 = scmp.lt.s32.totalorder %s28, 1
      %s510 = scalar_select %p509, %s28, 1
      %s511 = smul.addr %s510, 8
      %s512 = scalar_lea.vmem %s1, %s511
      %p513 = pneg %p75
      %p514 = pneg %p72
      %p515 = pneg %p96
      %p516 = pneg %p93
      %p517 = pneg %p117
      %p518 = pneg %p114
      %p519 = pneg %p138
      %p520 = pneg %p135
      %p521 = pneg %p159
      %p522 = pneg %p156
      %p523 = pneg %p180
      %p524 = pneg %p177
      %p525 = pneg %p201
      %p526 = pneg %p198
      %p527 = pneg %p222
      %p528 = pneg %p219
      %p529 = pneg %p243
      %p530 = pneg %p240
      %p531 = pneg %p264
      %p532 = pneg %p261
      %p533 = pneg %p285
      %p534 = pneg %p282
      %p535 = pneg %p306
      %p536 = pneg %p303
      %p537 = pneg %p327
      %p538 = pneg %p324
      %p539 = pneg %p348
      %p540 = pneg %p345
      %p541 = pneg %p369
      %p542 = pneg %p366
      %p543 = pneg %p390
      %p544 = pneg %p387
      %p545 = pneg %p416
      %p546 = pneg %p413
      %p547 = scmp.lt.s32.totalorder %s28, 1
      %s548 = scalar_select %p547, %s28, 1
      %s549 = smul.addr %s548, 3
      %s550 = smul.addr %s549, 4
      %s551 = scalar_lea.vmem %s17, %s550
      %p552 = scmp.lt.s32.totalorder %s28, 1
      %s553 = scalar_select %p552, %s28, 1
      %s554 = smul.addr %s553, 3
      %s555 = smul.addr %s554, 8
      %s556 = scalar_lea.vmem %s0, %s555
      %p557 = scmp.lt.s32.totalorder %s28, 1
      %s558 = scalar_select %p557, %s28, 1
      %s559 = smul.addr %s558, 8
      %s560 = scalar_lea.vmem %s1, %s559
      %p561 = scmp.lt.s32.totalorder %s28, 1
      %s562 = scalar_select %p561, %s28, 1
      %s563 = smul.addr %s562, 3
      %s564 = smul.addr %s563, 4
      %s565 = scalar_lea.vmem %s17, %s564
      %v566 = vld [vmem:[%s2] sm:$0x7]
      %v567 = vld [vmem:[%s556] sm:$0xff]
      %v568 = vld [vmem:[%s556 + $0x8] sm:$0xff]
      %v569 = vld [vmem:[%s556 + $0x10] sm:$0xff]
      %570 = vrot.lane.b32.xlu0 %v567, 127
      %v571 = vpop.permute.xlu0 %570
      %572 = vrot.lane.b32.xlu0 %v568, 127
      %v573 = vpop.permute.xlu0 %572
      %574 = vrot.lane.b32.xlu0 %v569, 127
      %v575 = vpop.permute.xlu0 %574
      %v576 = vlaneseq
      %v577 = vand.u32 %v576, 127
      %vm578 = vcmp.lt.s32.totalorder %v577, 127
      %v579 = vsel %vm578, %v573, %v575
      %v580 = vsel %vm578, %v571, %v573
      %v581 = vsel %vm578, %v575, %v571
      %582 = vrot.lane.b32.xlu0 %v567, 126
      %v583 = vpop.permute.xlu0 %582
      %584 = vrot.lane.b32.xlu0 %v568, 126
      %v585 = vpop.permute.xlu0 %584
      %586 = vrot.lane.b32.xlu0 %v569, 126
      %v587 = vpop.permute.xlu0 %586
      %vm588 = vcmp.lt.s32.totalorder %v577, 126
      %v589 = vsel %vm588, %v585, %v587
      %v590 = vsel %vm588, %v583, %v585
      %v591 = vsel %vm588, %v587, %v583
      %592 = vrot.lane.b32.xlu0 %v567, 110
      %v593 = vpop.permute.xlu0 %592
      %594 = vrot.lane.b32.xlu0 %v568, 110
      %v595 = vpop.permute.xlu0 %594
      %596 = vrot.lane.b32.xlu0 %v569, 110
      %v597 = vpop.permute.xlu0 %596
      %vm598 = vcmp.lt.s32.totalorder %v577, 110
      %v599 = vsel %vm598, %v595, %v597
      %v600 = vsel %vm598, %v593, %v595
      %v601 = vsel %vm598, %v597, %v593
      %602 = vrot.lane.b32.xlu0 %v567, 109
      %v603 = vpop.permute.xlu0 %602
      %604 = vrot.lane.b32.xlu0 %v568, 109
      %v605 = vpop.permute.xlu0 %604
      %606 = vrot.lane.b32.xlu0 %v569, 109
      %v607 = vpop.permute.xlu0 %606
      %vm608 = vcmp.lt.s32.totalorder %v577, 109
      %v609 = vsel %vm608, %v605, %v607
      %v610 = vsel %vm608, %v603, %v605
      %v611 = vsel %vm608, %v607, %v603
      %612 = vrot.lane.b32.xlu0 %v567, 108
      %v613 = vpop.permute.xlu0 %612
      %614 = vrot.lane.b32.xlu0 %v568, 108
      %v615 = vpop.permute.xlu0 %614
      %616 = vrot.lane.b32.xlu0 %v569, 108
      %v617 = vpop.permute.xlu0 %616
      %vm618 = vcmp.lt.s32.totalorder %v577, 108
      %v619 = vsel %vm618, %v615, %v617
      %v620 = vsel %vm618, %v613, %v615
      %v621 = vsel %vm618, %v617, %v613
      %622 = vrot.lane.b32.xlu0 %v567, 92
      %v623 = vpop.permute.xlu0 %622
      %624 = vrot.lane.b32.xlu0 %v568, 92
      %v625 = vpop.permute.xlu0 %624
      %626 = vrot.lane.b32.xlu0 %v569, 92
      %v627 = vpop.permute.xlu0 %626
      %vm628 = vcmp.lt.s32.totalorder %v577, 92
      %v629 = vsel %vm628, %v625, %v627
      %v630 = vsel %vm628, %v623, %v625
      %v631 = vsel %vm628, %v627, %v623
      %632 = vrot.lane.b32.xlu0 %v567, 91
      %v633 = vpop.permute.xlu0 %632
      %634 = vrot.lane.b32.xlu0 %v568, 91
      %v635 = vpop.permute.xlu0 %634
      %636 = vrot.lane.b32.xlu0 %v569, 91
      %v637 = vpop.permute.xlu0 %636
      %vm638 = vcmp.lt.s32.totalorder %v577, 91
      %v639 = vsel %vm638, %v635, %v637
      %v640 = vsel %vm638, %v633, %v635
      %v641 = vsel %vm638, %v637, %v633
      %642 = vrot.lane.b32.xlu0 %v567, 90
      %v643 = vpop.permute.xlu0 %642
      %644 = vrot.lane.b32.xlu0 %v568, 90
      %v645 = vpop.permute.xlu0 %644
      %646 = vrot.lane.b32.xlu0 %v569, 90
      %v647 = vpop.permute.xlu0 %646
      %vm648 = vcmp.lt.s32.totalorder %v577, 90
      %v649 = vsel %vm648, %v645, %v647
      %v650 = vsel %vm648, %v643, %v645
      %v651 = vsel %vm648, %v647, %v643
      %v652 = vld [vmem:[%s3] sm:$0xff]
      %v653 = vld [vmem:[%s3 + $0x8] sm:$0xff]
      %v654 = vld [vmem:[%s4] sm:$0xff]
      %v655 = vld [vmem:[%s4 + $0x8] sm:$0xff]
      %657 = vset.pattern.permute.xlu0 0
      %658 = vperm.xlu0 %657, %v654
      %v659 = vpop.permute.xlu0 %658
      %662 = vset.pattern.permute.xlu0 0
      %663 = vperm.xlu0 %662, %v655
      %v664 = vpop.permute.xlu0 %663
      %vm666 = vcmask 588800
      %v668 = vsel %vm666, %v652, 0
      %v671 = vsel %vm666, %v653, 0
      %673 = vmatpush.msra.mxu0 0.0
      %674 = vmatpush.msra.mxu0 0.0
      %675 = vmatpush.msra.mxu0 0.0
      %676 = vmatpush.msra.mxu0 0.0
      %677 = vmatpush.msra.mxu0 0.0
      %678 = vmatpush.msra.mxu0 0.0
      %679 = vmatpush.msra.mxu0 0.0
      %680 = vmatpush.msra.mxu0 %v650
      %681 = vmatpush.msra.mxu0 %v640
      %682 = vmatpush.msra.mxu0 %v630
      %683 = vmatpush.msra.mxu0 %v620
      %684 = vmatpush.msra.mxu0 %v610
      %685 = vmatpush.msra.mxu0 %v600
      %686 = vmatpush.msra.mxu0 %v590
      %687 = vmatpush.msra.mxu0 %v580
      %688 = vmatpush.msra.mxu0 %v567
      %689 = vmatmul.f32.gmra.mxu0 %v668
      %v690 = vpop.f32.mrf.mxu0
      %v691 = vadd.f32 %v659, %v690
      %692 = vmatmul.f32.gmra.mxu0 %v671
      %v693 = vpop.f32.mrf.mxu0
      %v694 = vadd.f32 %v664, %v693
      %695 = vdwg.mxu0
      %696 = vmatpush.msra.mxu0 0.0
      %697 = vmatpush.msra.mxu0 0.0
      %698 = vmatpush.msra.mxu0 0.0
      %699 = vmatpush.msra.mxu0 0.0
      %700 = vmatpush.msra.mxu0 0.0
      %701 = vmatpush.msra.mxu0 0.0
      %702 = vmatpush.msra.mxu0 0.0
      %703 = vmatpush.msra.mxu0 %v649
      %704 = vmatpush.msra.mxu0 %v639
      %705 = vmatpush.msra.mxu0 %v629
      %706 = vmatpush.msra.mxu0 %v619
      %707 = vmatpush.msra.mxu0 %v609
      %708 = vmatpush.msra.mxu0 %v599
      %709 = vmatpush.msra.mxu0 %v589
      %710 = vmatpush.msra.mxu0 %v579
      %711 = vmatpush.msra.mxu0 %v568
      %712 = vmatmul.f32.gmra.mxu0 %v668
      %v713 = vpop.f32.mrf.mxu0
      %v714 = vadd.f32 %v659, %v713
      %715 = vmatmul.f32.gmra.mxu0 %v671
      %v716 = vpop.f32.mrf.mxu0
      %v717 = vadd.f32 %v664, %v716
      %718 = vdwg.mxu0
      %719 = vmatpush.msra.mxu0 0.0
      %720 = vmatpush.msra.mxu0 0.0
      %721 = vmatpush.msra.mxu0 0.0
      %722 = vmatpush.msra.mxu0 0.0
      %723 = vmatpush.msra.mxu0 0.0
      %724 = vmatpush.msra.mxu0 0.0
      %725 = vmatpush.msra.mxu0 0.0
      %726 = vmatpush.msra.mxu0 %v651
      %727 = vmatpush.msra.mxu0 %v641
      %728 = vmatpush.msra.mxu0 %v631
      %729 = vmatpush.msra.mxu0 %v621
      %730 = vmatpush.msra.mxu0 %v611
      %731 = vmatpush.msra.mxu0 %v601
      %732 = vmatpush.msra.mxu0 %v591
      %733 = vmatpush.msra.mxu0 %v581
      %734 = vmatpush.msra.mxu0 %v569
      %735 = vmatmul.f32.gmra.mxu0 %v668
      %v736 = vpop.f32.mrf.mxu0
      %v737 = vadd.f32 %v659, %v736
      %738 = vmatmul.f32.gmra.mxu0 %v671
      %v739 = vpop.f32.mrf.mxu0
      %v740 = vadd.f32 %v664, %v739
      %741 = vdwg.mxu0
      %v742 = vmax.f32 %v691, 0.0
      %v743 = vmax.f32 %v714, 0.0
      %v744 = vmax.f32 %v737, 0.0
      %v745 = vmax.f32 %v694, 0.0
      %v746 = vmax.f32 %v717, 0.0
      %v747 = vmax.f32 %v740, 0.0
      %748 = vrot.lane.b32.xlu0 %v742, 19
      %v749 = vpop.permute.xlu0 %748
      %750 = vrot.lane.b32.xlu0 %v745, 19
      %v751 = vpop.permute.xlu0 %750
      %752 = vrot.lane.b32.xlu0 %v743, 19
      %v753 = vpop.permute.xlu0 %752
      %754 = vrot.lane.b32.xlu0 %v746, 19
      %v755 = vpop.permute.xlu0 %754
      %756 = vrot.lane.b32.xlu0 %v744, 19
      %v757 = vpop.permute.xlu0 %756
      %758 = vrot.lane.b32.xlu0 %v747, 19
      %v759 = vpop.permute.xlu0 %758
      %vm760 = vcmp.lt.s32.totalorder %v577, 19
      %v761 = vsel %vm760, %v753, %v757
      %v762 = vsel %vm760, %v755, %v759
      %v763 = vsel %vm760, %v749, %v753
      %v764 = vsel %vm760, %v751, %v755
      %v765 = vsel %vm760, %v757, %v749
      %v766 = vsel %vm760, %v759, %v751
      %v768 = vperm.slane %v566, 0
      %v769 = vperm.slane %v566, 1
      %v770 = vperm.slane %v566, 2
      %v774 = vmul.f32 %v765, %v768
      %v775 = vmul.f32 %v763, %v769
      %v776 = vmul.f32 %v761, %v770
      %v777 = vmul.f32 %v766, %v768
      %v778 = vmul.f32 %v764, %v769
      %v779 = vmul.f32 %v762, %v770
      %780 = vrot.lane.b32.xlu0 %v774, 127
      %v781 = vpop.permute.xlu0 %780
      %782 = vrot.lane.b32.xlu0 %v777, 127
      %v783 = vpop.permute.xlu0 %782
      %784 = vrot.lane.b32.xlu0 %v775, 127
      %v785 = vpop.permute.xlu0 %784
      %786 = vrot.lane.b32.xlu0 %v778, 127
      %v787 = vpop.permute.xlu0 %786
      %788 = vrot.lane.b32.xlu0 %v776, 127
      %v789 = vpop.permute.xlu0 %788
      %790 = vrot.lane.b32.xlu0 %v779, 127
      %v791 = vpop.permute.xlu0 %790
      %v792 = vsel %vm578, %v785, %v789
      %v793 = vsel %vm578, %v787, %v791
      %v794 = vsel %vm578, %v781, %v785
      %v795 = vsel %vm578, %v783, %v787
      %v796 = vsel %vm578, %v789, %v781
      %v797 = vsel %vm578, %v791, %v783
      %798 = vrot.lane.b32.xlu0 %v774, 126
      %v799 = vpop.permute.xlu0 %798
      %800 = vrot.lane.b32.xlu0 %v777, 126
      %v801 = vpop.permute.xlu0 %800
      %802 = vrot.lane.b32.xlu0 %v775, 126
      %v803 = vpop.permute.xlu0 %802
      %804 = vrot.lane.b32.xlu0 %v778, 126
      %v805 = vpop.permute.xlu0 %804
      %806 = vrot.lane.b32.xlu0 %v776, 126
      %v807 = vpop.permute.xlu0 %806
      %808 = vrot.lane.b32.xlu0 %v779, 126
      %v809 = vpop.permute.xlu0 %808
      %v810 = vsel %vm588, %v803, %v807
      %v811 = vsel %vm588, %v805, %v809
      %v812 = vsel %vm588, %v799, %v803
      %v813 = vsel %vm588, %v801, %v805
      %v814 = vsel %vm588, %v807, %v799
      %v815 = vsel %vm588, %v809, %v801
      %816 = vrot.lane.b32.xlu0 %v774, 110
      %v817 = vpop.permute.xlu0 %816
      %818 = vrot.lane.b32.xlu0 %v777, 110
      %v819 = vpop.permute.xlu0 %818
      %820 = vrot.lane.b32.xlu0 %v775, 110
      %v821 = vpop.permute.xlu0 %820
      %822 = vrot.lane.b32.xlu0 %v778, 110
      %v823 = vpop.permute.xlu0 %822
      %824 = vrot.lane.b32.xlu0 %v776, 110
      %v825 = vpop.permute.xlu0 %824
      %826 = vrot.lane.b32.xlu0 %v779, 110
      %v827 = vpop.permute.xlu0 %826
      %v828 = vsel %vm598, %v821, %v825
      %v829 = vsel %vm598, %v823, %v827
      %v830 = vsel %vm598, %v817, %v821
      %v831 = vsel %vm598, %v819, %v823
      %v832 = vsel %vm598, %v825, %v817
      %v833 = vsel %vm598, %v827, %v819
      %834 = vrot.lane.b32.xlu0 %v774, 109
      %v835 = vpop.permute.xlu0 %834
      %836 = vrot.lane.b32.xlu0 %v777, 109
      %v837 = vpop.permute.xlu0 %836
      %838 = vrot.lane.b32.xlu0 %v775, 109
      %v839 = vpop.permute.xlu0 %838
      %840 = vrot.lane.b32.xlu0 %v778, 109
      %v841 = vpop.permute.xlu0 %840
      %842 = vrot.lane.b32.xlu0 %v776, 109
      %v843 = vpop.permute.xlu0 %842
      %844 = vrot.lane.b32.xlu0 %v779, 109
      %v845 = vpop.permute.xlu0 %844
      %v846 = vsel %vm608, %v839, %v843
      %v847 = vsel %vm608, %v841, %v845
      %v848 = vsel %vm608, %v835, %v839
      %v849 = vsel %vm608, %v837, %v841
      %v850 = vsel %vm608, %v843, %v835
      %v851 = vsel %vm608, %v845, %v837
      %852 = vrot.lane.b32.xlu0 %v774, 108
      %v853 = vpop.permute.xlu0 %852
      %854 = vrot.lane.b32.xlu0 %v777, 108
      %v855 = vpop.permute.xlu0 %854
      %856 = vrot.lane.b32.xlu0 %v775, 108
      %v857 = vpop.permute.xlu0 %856
      %858 = vrot.lane.b32.xlu0 %v778, 108
      %v859 = vpop.permute.xlu0 %858
      %860 = vrot.lane.b32.xlu0 %v776, 108
      %v861 = vpop.permute.xlu0 %860
      %862 = vrot.lane.b32.xlu0 %v779, 108
      %v863 = vpop.permute.xlu0 %862
      %v864 = vsel %vm618, %v857, %v861
      %v865 = vsel %vm618, %v859, %v863
      %v866 = vsel %vm618, %v853, %v857
      %v867 = vsel %vm618, %v855, %v859
      %v868 = vsel %vm618, %v861, %v853
      %v869 = vsel %vm618, %v863, %v855
      %870 = vrot.lane.b32.xlu0 %v774, 92
      %v871 = vpop.permute.xlu0 %870
      %872 = vrot.lane.b32.xlu0 %v777, 92
      %v873 = vpop.permute.xlu0 %872
      %874 = vrot.lane.b32.xlu0 %v775, 92
      %v875 = vpop.permute.xlu0 %874
      %876 = vrot.lane.b32.xlu0 %v778, 92
      %v877 = vpop.permute.xlu0 %876
      %878 = vrot.lane.b32.xlu0 %v776, 92
      %v879 = vpop.permute.xlu0 %878
      %880 = vrot.lane.b32.xlu0 %v779, 92
      %v881 = vpop.permute.xlu0 %880
      %v882 = vsel %vm628, %v875, %v879
      %v883 = vsel %vm628, %v877, %v881
      %v884 = vsel %vm628, %v871, %v875
      %v885 = vsel %vm628, %v873, %v877
      %v886 = vsel %vm628, %v879, %v871
      %v887 = vsel %vm628, %v881, %v873
      %888 = vrot.lane.b32.xlu0 %v774, 91
      %v889 = vpop.permute.xlu0 %888
      %890 = vrot.lane.b32.xlu0 %v777, 91
      %v891 = vpop.permute.xlu0 %890
      %892 = vrot.lane.b32.xlu0 %v775, 91
      %v893 = vpop.permute.xlu0 %892
      %894 = vrot.lane.b32.xlu0 %v778, 91
      %v895 = vpop.permute.xlu0 %894
      %896 = vrot.lane.b32.xlu0 %v776, 91
      %v897 = vpop.permute.xlu0 %896
      %898 = vrot.lane.b32.xlu0 %v779, 91
      %v899 = vpop.permute.xlu0 %898
      %v900 = vsel %vm638, %v893, %v897
      %v901 = vsel %vm638, %v895, %v899
      %v902 = vsel %vm638, %v889, %v893
      %v903 = vsel %vm638, %v891, %v895
      %v904 = vsel %vm638, %v897, %v889
      %v905 = vsel %vm638, %v899, %v891
      %906 = vrot.lane.b32.xlu0 %v774, 90
      %v907 = vpop.permute.xlu0 %906
      %908 = vrot.lane.b32.xlu0 %v777, 90
      %v909 = vpop.permute.xlu0 %908
      %910 = vrot.lane.b32.xlu0 %v775, 90
      %v911 = vpop.permute.xlu0 %910
      %912 = vrot.lane.b32.xlu0 %v778, 90
      %v913 = vpop.permute.xlu0 %912
      %914 = vrot.lane.b32.xlu0 %v776, 90
      %v915 = vpop.permute.xlu0 %914
      %916 = vrot.lane.b32.xlu0 %v779, 90
      %v917 = vpop.permute.xlu0 %916
      %v918 = vsel %vm648, %v911, %v915
      %v919 = vsel %vm648, %v913, %v917
      %v920 = vsel %vm648, %v907, %v911
      %v921 = vsel %vm648, %v909, %v913
      %v922 = vsel %vm648, %v915, %v907
      %v923 = vsel %vm648, %v917, %v909
      %v924 = vld [vmem:[%s5] sm:$0xff]
      %v925 = vld [vmem:[%s5 + $0x8] sm:$0xff]
      %v926 = vld [vmem:[%s5 + $0x10] sm:$0xff]
      %v927 = vld [vmem:[%s5 + $0x18] sm:$0xff]
      %v928 = vld [vmem:[%s6] sm:$0xff]
      %v929 = vld [vmem:[%s6 + $0x8] sm:$0xff]
      %931 = vset.pattern.permute.xlu0 0
      %932 = vperm.xlu0 %931, %v928
      %v933 = vpop.permute.xlu0 %932
      %936 = vset.pattern.permute.xlu0 0
      %937 = vperm.xlu0 %936, %v929
      %v938 = vpop.permute.xlu0 %937
      %vm940 = vcmask 130048
      %v942 = vsel %vm940, %v925, 0
      %v945 = vsel %vm940, %v927, 0
      %947 = vmatpush.msra.mxu0 %v903
      %948 = vmatpush.msra.mxu0 %v902
      %949 = vmatpush.msra.mxu0 %v885
      %950 = vmatpush.msra.mxu0 %v884
      %951 = vmatpush.msra.mxu0 %v867
      %952 = vmatpush.msra.mxu0 %v866
      %953 = vmatpush.msra.mxu0 %v849
      %954 = vmatpush.msra.mxu0 %v848
      %955 = vmatpush.msra.mxu0 %v831
      %956 = vmatpush.msra.mxu0 %v830
      %957 = vmatpush.msra.mxu0 %v813
      %958 = vmatpush.msra.mxu0 %v812
      %959 = vmatpush.msra.mxu0 %v795
      %960 = vmatpush.msra.mxu0 %v794
      %961 = vmatpush.msra.mxu0 %v777
      %962 = vmatpush.msra.mxu0 %v774
      %963 = vmatmul.f32.gmra.mxu0 %v924
      %v964 = vpop.f32.mrf.mxu0
      %v965 = vadd.f32 %v933, %v964
      %966 = vmatmul.f32.gmra.mxu0 %v926
      %v967 = vpop.f32.mrf.mxu0
      %v968 = vadd.f32 %v938, %v967
      %969 = vdwg.mxu0
      %970 = vmatpush.msra.mxu0 0.0
      %971 = vmatpush.msra.mxu0 0.0
      %972 = vmatpush.msra.mxu0 0.0
      %973 = vmatpush.msra.mxu0 0.0
      %974 = vmatpush.msra.mxu0 0.0
      %975 = vmatpush.msra.mxu0 0.0
      %976 = vmatpush.msra.mxu0 0.0
      %977 = vmatpush.msra.mxu0 0.0
      %978 = vmatpush.msra.mxu0 0.0
      %979 = vmatpush.msra.mxu0 0.0
      %980 = vmatpush.msra.mxu0 0.0
      %981 = vmatpush.msra.mxu0 0.0
      %982 = vmatpush.msra.mxu0 0.0
      %983 = vmatpush.msra.mxu0 0.0
      %984 = vmatpush.msra.mxu0 %v921
      %985 = vmatpush.msra.mxu0 %v920
      %986 = vmatmul.f32.gmra.mxu0 %v942
      %v987 = vpop.f32.mrf.mxu0
      %v988 = vadd.f32 %v965, %v987
      %989 = vmatmul.f32.gmra.mxu0 %v945
      %v990 = vpop.f32.mrf.mxu0
      %v991 = vadd.f32 %v968, %v990
      %992 = vdwg.mxu0
      %993 = vmatpush.msra.mxu0 %v901
      %994 = vmatpush.msra.mxu0 %v900
      %995 = vmatpush.msra.mxu0 %v883
      %996 = vmatpush.msra.mxu0 %v882
      %997 = vmatpush.msra.mxu0 %v865
      %998 = vmatpush.msra.mxu0 %v864
      %999 = vmatpush.msra.mxu0 %v847
      %1000 = vmatpush.msra.mxu0 %v846
      %1001 = vmatpush.msra.mxu0 %v829
      %1002 = vmatpush.msra.mxu0 %v828
      %1003 = vmatpush.msra.mxu0 %v811
      %1004 = vmatpush.msra.mxu0 %v810
      %1005 = vmatpush.msra.mxu0 %v793
      %1006 = vmatpush.msra.mxu0 %v792
      %1007 = vmatpush.msra.mxu0 %v778
      %1008 = vmatpush.msra.mxu0 %v775
      %1009 = vmatmul.f32.gmra.mxu0 %v924
      %v1010 = vpop.f32.mrf.mxu0
      %v1011 = vadd.f32 %v933, %v1010
      %1012 = vmatmul.f32.gmra.mxu0 %v926
      %v1013 = vpop.f32.mrf.mxu0
      %v1014 = vadd.f32 %v938, %v1013
      %1015 = vdwg.mxu0
      %1016 = vmatpush.msra.mxu0 0.0
      %1017 = vmatpush.msra.mxu0 0.0
      %1018 = vmatpush.msra.mxu0 0.0
      %1019 = vmatpush.msra.mxu0 0.0
      %1020 = vmatpush.msra.mxu0 0.0
      %1021 = vmatpush.msra.mxu0 0.0
      %1022 = vmatpush.msra.mxu0 0.0
      %1023 = vmatpush.msra.mxu0 0.0
      %1024 = vmatpush.msra.mxu0 0.0
      %1025 = vmatpush.msra.mxu0 0.0
      %1026 = vmatpush.msra.mxu0 0.0
      %1027 = vmatpush.msra.mxu0 0.0
      %1028 = vmatpush.msra.mxu0 0.0
      %1029 = vmatpush.msra.mxu0 0.0
      %1030 = vmatpush.msra.mxu0 %v919
      %1031 = vmatpush.msra.mxu0 %v918
      %1032 = vmatmul.f32.gmra.mxu0 %v942
      %v1033 = vpop.f32.mrf.mxu0
      %v1034 = vadd.f32 %v1011, %v1033
      %1035 = vmatmul.f32.gmra.mxu0 %v945
      %v1036 = vpop.f32.mrf.mxu0
      %v1037 = vadd.f32 %v1014, %v1036
      %1038 = vdwg.mxu0
      %1039 = vmatpush.msra.mxu0 %v905
      %1040 = vmatpush.msra.mxu0 %v904
      %1041 = vmatpush.msra.mxu0 %v887
      %1042 = vmatpush.msra.mxu0 %v886
      %1043 = vmatpush.msra.mxu0 %v869
      %1044 = vmatpush.msra.mxu0 %v868
      %1045 = vmatpush.msra.mxu0 %v851
      %1046 = vmatpush.msra.mxu0 %v850
      %1047 = vmatpush.msra.mxu0 %v833
      %1048 = vmatpush.msra.mxu0 %v832
      %1049 = vmatpush.msra.mxu0 %v815
      %1050 = vmatpush.msra.mxu0 %v814
      %1051 = vmatpush.msra.mxu0 %v797
      %1052 = vmatpush.msra.mxu0 %v796
      %1053 = vmatpush.msra.mxu0 %v779
      %1054 = vmatpush.msra.mxu0 %v776
      %1055 = vmatmul.f32.gmra.mxu0 %v924
      %v1056 = vpop.f32.mrf.mxu0
      %v1057 = vadd.f32 %v933, %v1056
      %1058 = vmatmul.f32.gmra.mxu0 %v926
      %v1059 = vpop.f32.mrf.mxu0
      %v1060 = vadd.f32 %v938, %v1059
      %1061 = vdwg.mxu0
      %1062 = vmatpush.msra.mxu0 0.0
      %1063 = vmatpush.msra.mxu0 0.0
      %1064 = vmatpush.msra.mxu0 0.0
      %1065 = vmatpush.msra.mxu0 0.0
      %1066 = vmatpush.msra.mxu0 0.0
      %1067 = vmatpush.msra.mxu0 0.0
      %1068 = vmatpush.msra.mxu0 0.0
      %1069 = vmatpush.msra.mxu0 0.0
      %1070 = vmatpush.msra.mxu0 0.0
      %1071 = vmatpush.msra.mxu0 0.0
      %1072 = vmatpush.msra.mxu0 0.0
      %1073 = vmatpush.msra.mxu0 0.0
      %1074 = vmatpush.msra.mxu0 0.0
      %1075 = vmatpush.msra.mxu0 0.0
      %1076 = vmatpush.msra.mxu0 %v923
      %1077 = vmatpush.msra.mxu0 %v922
      %1078 = vmatmul.f32.gmra.mxu0 %v942
      %v1079 = vpop.f32.mrf.mxu0
      %v1080 = vadd.f32 %v1057, %v1079
      %1081 = vmatmul.f32.gmra.mxu0 %v945
      %v1082 = vpop.f32.mrf.mxu0
      %v1083 = vadd.f32 %v1060, %v1082
      %1084 = vdwg.mxu0
      %v1085 = vmax.f32 %v988, 0.0
      %v1086 = vmax.f32 %v1034, 0.0
      %v1087 = vmax.f32 %v1080, 0.0
      %v1088 = vmax.f32 %v991, 0.0
      %v1089 = vmax.f32 %v1037, 0.0
      %v1090 = vmax.f32 %v1083, 0.0
      %1091 = vrot.lane.b32.xlu0 %v1085, 19
      %v1092 = vpop.permute.xlu0 %1091
      %1093 = vrot.lane.b32.xlu0 %v1088, 19
      %v1094 = vpop.permute.xlu0 %1093
      %1095 = vrot.lane.b32.xlu0 %v1086, 19
      %v1096 = vpop.permute.xlu0 %1095
      %1097 = vrot.lane.b32.xlu0 %v1089, 19
      %v1098 = vpop.permute.xlu0 %1097
      %1099 = vrot.lane.b32.xlu0 %v1087, 19
      %v1100 = vpop.permute.xlu0 %1099
      %1101 = vrot.lane.b32.xlu0 %v1090, 19
      %v1102 = vpop.permute.xlu0 %1101
      %v1103 = vsel %vm760, %v1096, %v1100
      %v1104 = vsel %vm760, %v1098, %v1102
      %v1105 = vsel %vm760, %v1092, %v1096
      %v1106 = vsel %vm760, %v1094, %v1098
      %v1107 = vsel %vm760, %v1100, %v1092
      %v1108 = vsel %vm760, %v1102, %v1094
      %v1109 = vmul.f32 %v1107, %v768
      %v1110 = vmul.f32 %v1105, %v769
      %v1111 = vmul.f32 %v1103, %v770
      %v1112 = vmul.f32 %v1108, %v768
      %v1113 = vmul.f32 %v1106, %v769
      %v1114 = vmul.f32 %v1104, %v770
      %1115 = vrot.lane.b32.xlu0 %v1109, 127
      %v1116 = vpop.permute.xlu0 %1115
      %1117 = vrot.lane.b32.xlu0 %v1112, 127
      %v1118 = vpop.permute.xlu0 %1117
      %1119 = vrot.lane.b32.xlu0 %v1110, 127
      %v1120 = vpop.permute.xlu0 %1119
      %1121 = vrot.lane.b32.xlu0 %v1113, 127
      %v1122 = vpop.permute.xlu0 %1121
      %1123 = vrot.lane.b32.xlu0 %v1111, 127
      %v1124 = vpop.permute.xlu0 %1123
      %1125 = vrot.lane.b32.xlu0 %v1114, 127
      %v1126 = vpop.permute.xlu0 %1125
      %v1127 = vsel %vm578, %v1120, %v1124
      %v1128 = vsel %vm578, %v1122, %v1126
      %v1129 = vsel %vm578, %v1116, %v1120
      %v1130 = vsel %vm578, %v1118, %v1122
      %v1131 = vsel %vm578, %v1124, %v1116
      %v1132 = vsel %vm578, %v1126, %v1118
      %1133 = vrot.lane.b32.xlu0 %v1109, 126
      %v1134 = vpop.permute.xlu0 %1133
      %1135 = vrot.lane.b32.xlu0 %v1112, 126
      %v1136 = vpop.permute.xlu0 %1135
      %1137 = vrot.lane.b32.xlu0 %v1110, 126
      %v1138 = vpop.permute.xlu0 %1137
      %1139 = vrot.lane.b32.xlu0 %v1113, 126
      %v1140 = vpop.permute.xlu0 %1139
      %1141 = vrot.lane.b32.xlu0 %v1111, 126
      %v1142 = vpop.permute.xlu0 %1141
      %1143 = vrot.lane.b32.xlu0 %v1114, 126
      %v1144 = vpop.permute.xlu0 %1143
      %v1145 = vsel %vm588, %v1138, %v1142
      %v1146 = vsel %vm588, %v1140, %v1144
      %v1147 = vsel %vm588, %v1134, %v1138
      %v1148 = vsel %vm588, %v1136, %v1140
      %v1149 = vsel %vm588, %v1142, %v1134
      %v1150 = vsel %vm588, %v1144, %v1136
      %1151 = vrot.lane.b32.xlu0 %v1109, 110
      %v1152 = vpop.permute.xlu0 %1151
      %1153 = vrot.lane.b32.xlu0 %v1112, 110
      %v1154 = vpop.permute.xlu0 %1153
      %1155 = vrot.lane.b32.xlu0 %v1110, 110
      %v1156 = vpop.permute.xlu0 %1155
      %1157 = vrot.lane.b32.xlu0 %v1113, 110
      %v1158 = vpop.permute.xlu0 %1157
      %1159 = vrot.lane.b32.xlu0 %v1111, 110
      %v1160 = vpop.permute.xlu0 %1159
      %1161 = vrot.lane.b32.xlu0 %v1114, 110
      %v1162 = vpop.permute.xlu0 %1161
      %v1163 = vsel %vm598, %v1156, %v1160
      %v1164 = vsel %vm598, %v1158, %v1162
      %v1165 = vsel %vm598, %v1152, %v1156
      %v1166 = vsel %vm598, %v1154, %v1158
      %v1167 = vsel %vm598, %v1160, %v1152
      %v1168 = vsel %vm598, %v1162, %v1154
      %1169 = vrot.lane.b32.xlu0 %v1109, 109
      %v1170 = vpop.permute.xlu0 %1169
      %1171 = vrot.lane.b32.xlu0 %v1112, 109
      %v1172 = vpop.permute.xlu0 %1171
      %1173 = vrot.lane.b32.xlu0 %v1110, 109
      %v1174 = vpop.permute.xlu0 %1173
      %1175 = vrot.lane.b32.xlu0 %v1113, 109
      %v1176 = vpop.permute.xlu0 %1175
      %1177 = vrot.lane.b32.xlu0 %v1111, 109
      %v1178 = vpop.permute.xlu0 %1177
      %1179 = vrot.lane.b32.xlu0 %v1114, 109
      %v1180 = vpop.permute.xlu0 %1179
      %v1181 = vsel %vm608, %v1174, %v1178
      %v1182 = vsel %vm608, %v1176, %v1180
      %v1183 = vsel %vm608, %v1170, %v1174
      %v1184 = vsel %vm608, %v1172, %v1176
      %v1185 = vsel %vm608, %v1178, %v1170
      %v1186 = vsel %vm608, %v1180, %v1172
      %1187 = vrot.lane.b32.xlu0 %v1109, 108
      %v1188 = vpop.permute.xlu0 %1187
      %1189 = vrot.lane.b32.xlu0 %v1112, 108
      %v1190 = vpop.permute.xlu0 %1189
      %1191 = vrot.lane.b32.xlu0 %v1110, 108
      %v1192 = vpop.permute.xlu0 %1191
      %1193 = vrot.lane.b32.xlu0 %v1113, 108
      %v1194 = vpop.permute.xlu0 %1193
      %1195 = vrot.lane.b32.xlu0 %v1111, 108
      %v1196 = vpop.permute.xlu0 %1195
      %1197 = vrot.lane.b32.xlu0 %v1114, 108
      %v1198 = vpop.permute.xlu0 %1197
      %v1199 = vsel %vm618, %v1192, %v1196
      %v1200 = vsel %vm618, %v1194, %v1198
      %v1201 = vsel %vm618, %v1188, %v1192
      %v1202 = vsel %vm618, %v1190, %v1194
      %v1203 = vsel %vm618, %v1196, %v1188
      %v1204 = vsel %vm618, %v1198, %v1190
      %1205 = vrot.lane.b32.xlu0 %v1109, 92
      %v1206 = vpop.permute.xlu0 %1205
      %1207 = vrot.lane.b32.xlu0 %v1112, 92
      %v1208 = vpop.permute.xlu0 %1207
      %1209 = vrot.lane.b32.xlu0 %v1110, 92
      %v1210 = vpop.permute.xlu0 %1209
      %1211 = vrot.lane.b32.xlu0 %v1113, 92
      %v1212 = vpop.permute.xlu0 %1211
      %1213 = vrot.lane.b32.xlu0 %v1111, 92
      %v1214 = vpop.permute.xlu0 %1213
      %1215 = vrot.lane.b32.xlu0 %v1114, 92
      %v1216 = vpop.permute.xlu0 %1215
      %v1217 = vsel %vm628, %v1210, %v1214
      %v1218 = vsel %vm628, %v1212, %v1216
      %v1219 = vsel %vm628, %v1206, %v1210
      %v1220 = vsel %vm628, %v1208, %v1212
      %v1221 = vsel %vm628, %v1214, %v1206
      %v1222 = vsel %vm628, %v1216, %v1208
      %1223 = vrot.lane.b32.xlu0 %v1109, 91
      %v1224 = vpop.permute.xlu0 %1223
      %1225 = vrot.lane.b32.xlu0 %v1112, 91
      %v1226 = vpop.permute.xlu0 %1225
      %1227 = vrot.lane.b32.xlu0 %v1110, 91
      %v1228 = vpop.permute.xlu0 %1227
      %1229 = vrot.lane.b32.xlu0 %v1113, 91
      %v1230 = vpop.permute.xlu0 %1229
      %1231 = vrot.lane.b32.xlu0 %v1111, 91
      %v1232 = vpop.permute.xlu0 %1231
      %1233 = vrot.lane.b32.xlu0 %v1114, 91
      %v1234 = vpop.permute.xlu0 %1233
      %v1235 = vsel %vm638, %v1228, %v1232
      %v1236 = vsel %vm638, %v1230, %v1234
      %v1237 = vsel %vm638, %v1224, %v1228
      %v1238 = vsel %vm638, %v1226, %v1230
      %v1239 = vsel %vm638, %v1232, %v1224
      %v1240 = vsel %vm638, %v1234, %v1226
      %1241 = vrot.lane.b32.xlu0 %v1109, 90
      %v1242 = vpop.permute.xlu0 %1241
      %1243 = vrot.lane.b32.xlu0 %v1112, 90
      %v1244 = vpop.permute.xlu0 %1243
      %1245 = vrot.lane.b32.xlu0 %v1110, 90
      %v1246 = vpop.permute.xlu0 %1245
      %1247 = vrot.lane.b32.xlu0 %v1113, 90
      %v1248 = vpop.permute.xlu0 %1247
      %1249 = vrot.lane.b32.xlu0 %v1111, 90
      %v1250 = vpop.permute.xlu0 %1249
      %1251 = vrot.lane.b32.xlu0 %v1114, 90
      %v1252 = vpop.permute.xlu0 %1251
      %v1253 = vsel %vm648, %v1246, %v1250
      %v1254 = vsel %vm648, %v1248, %v1252
      %v1255 = vsel %vm648, %v1242, %v1246
      %v1256 = vsel %vm648, %v1244, %v1248
      %v1257 = vsel %vm648, %v1250, %v1242
      %v1258 = vsel %vm648, %v1252, %v1244
      %v1259 = vld [vmem:[%s7] sm:$0xff]
      %v1260 = vld [vmem:[%s7 + $0x8] sm:$0xff]
      %v1261 = vld [vmem:[%s7 + $0x10] sm:$0xff]
      %v1262 = vld [vmem:[%s7 + $0x18] sm:$0xff]
      %v1263 = vld [vmem:[%s8] sm:$0xff]
      %v1264 = vld [vmem:[%s8 + $0x8] sm:$0xff]
      %1266 = vset.pattern.permute.xlu0 0
      %1267 = vperm.xlu0 %1266, %v1263
      %v1268 = vpop.permute.xlu0 %1267
      %1271 = vset.pattern.permute.xlu0 0
      %1272 = vperm.xlu0 %1271, %v1264
      %v1273 = vpop.permute.xlu0 %1272
      %v1276 = vsel %vm940, %v1260, 0
      %v1279 = vsel %vm940, %v1262, 0
      %1281 = vmatpush.msra.mxu0 %v1238
      %1282 = vmatpush.msra.mxu0 %v1237
      %1283 = vmatpush.msra.mxu0 %v1220
      %1284 = vmatpush.msra.mxu0 %v1219
      %1285 = vmatpush.msra.mxu0 %v1202
      %1286 = vmatpush.msra.mxu0 %v1201
      %1287 = vmatpush.msra.mxu0 %v1184
      %1288 = vmatpush.msra.mxu0 %v1183
      %1289 = vmatpush.msra.mxu0 %v1166
      %1290 = vmatpush.msra.mxu0 %v1165
      %1291 = vmatpush.msra.mxu0 %v1148
      %1292 = vmatpush.msra.mxu0 %v1147
      %1293 = vmatpush.msra.mxu0 %v1130
      %1294 = vmatpush.msra.mxu0 %v1129
      %1295 = vmatpush.msra.mxu0 %v1112
      %1296 = vmatpush.msra.mxu0 %v1109
      %1297 = vmatmul.f32.gmra.mxu0 %v1259
      %v1298 = vpop.f32.mrf.mxu0
      %v1299 = vadd.f32 %v1268, %v1298
      %1300 = vmatmul.f32.gmra.mxu0 %v1261
      %v1301 = vpop.f32.mrf.mxu0
      %v1302 = vadd.f32 %v1273, %v1301
      %1303 = vdwg.mxu0
      %1304 = vmatpush.msra.mxu0 0.0
      %1305 = vmatpush.msra.mxu0 0.0
      %1306 = vmatpush.msra.mxu0 0.0
      %1307 = vmatpush.msra.mxu0 0.0
      %1308 = vmatpush.msra.mxu0 0.0
      %1309 = vmatpush.msra.mxu0 0.0
      %1310 = vmatpush.msra.mxu0 0.0
      %1311 = vmatpush.msra.mxu0 0.0
      %1312 = vmatpush.msra.mxu0 0.0
      %1313 = vmatpush.msra.mxu0 0.0
      %1314 = vmatpush.msra.mxu0 0.0
      %1315 = vmatpush.msra.mxu0 0.0
      %1316 = vmatpush.msra.mxu0 0.0
      %1317 = vmatpush.msra.mxu0 0.0
      %1318 = vmatpush.msra.mxu0 %v1256
      %1319 = vmatpush.msra.mxu0 %v1255
      %1320 = vmatmul.f32.gmra.mxu0 %v1276
      %v1321 = vpop.f32.mrf.mxu0
      %v1322 = vadd.f32 %v1299, %v1321
      %1323 = vmatmul.f32.gmra.mxu0 %v1279
      %v1324 = vpop.f32.mrf.mxu0
      %v1325 = vadd.f32 %v1302, %v1324
      %1326 = vdwg.mxu0
      %1327 = vmatpush.msra.mxu0 %v1236
      %1328 = vmatpush.msra.mxu0 %v1235
      %1329 = vmatpush.msra.mxu0 %v1218
      %1330 = vmatpush.msra.mxu0 %v1217
      %1331 = vmatpush.msra.mxu0 %v1200
      %1332 = vmatpush.msra.mxu0 %v1199
      %1333 = vmatpush.msra.mxu0 %v1182
      %1334 = vmatpush.msra.mxu0 %v1181
      %1335 = vmatpush.msra.mxu0 %v1164
      %1336 = vmatpush.msra.mxu0 %v1163
      %1337 = vmatpush.msra.mxu0 %v1146
      %1338 = vmatpush.msra.mxu0 %v1145
      %1339 = vmatpush.msra.mxu0 %v1128
      %1340 = vmatpush.msra.mxu0 %v1127
      %1341 = vmatpush.msra.mxu0 %v1113
      %1342 = vmatpush.msra.mxu0 %v1110
      %1343 = vmatmul.f32.gmra.mxu0 %v1259
      %v1344 = vpop.f32.mrf.mxu0
      %v1345 = vadd.f32 %v1268, %v1344
      %1346 = vmatmul.f32.gmra.mxu0 %v1261
      %v1347 = vpop.f32.mrf.mxu0
      %v1348 = vadd.f32 %v1273, %v1347
      %1349 = vdwg.mxu0
      %1350 = vmatpush.msra.mxu0 0.0
      %1351 = vmatpush.msra.mxu0 0.0
      %1352 = vmatpush.msra.mxu0 0.0
      %1353 = vmatpush.msra.mxu0 0.0
      %1354 = vmatpush.msra.mxu0 0.0
      %1355 = vmatpush.msra.mxu0 0.0
      %1356 = vmatpush.msra.mxu0 0.0
      %1357 = vmatpush.msra.mxu0 0.0
      %1358 = vmatpush.msra.mxu0 0.0
      %1359 = vmatpush.msra.mxu0 0.0
      %1360 = vmatpush.msra.mxu0 0.0
      %1361 = vmatpush.msra.mxu0 0.0
      %1362 = vmatpush.msra.mxu0 0.0
      %1363 = vmatpush.msra.mxu0 0.0
      %1364 = vmatpush.msra.mxu0 %v1254
      %1365 = vmatpush.msra.mxu0 %v1253
      %1366 = vmatmul.f32.gmra.mxu0 %v1276
      %v1367 = vpop.f32.mrf.mxu0
      %v1368 = vadd.f32 %v1345, %v1367
      %1369 = vmatmul.f32.gmra.mxu0 %v1279
      %v1370 = vpop.f32.mrf.mxu0
      %v1371 = vadd.f32 %v1348, %v1370
      %1372 = vdwg.mxu0
      %1373 = vmatpush.msra.mxu0 %v1240
      %1374 = vmatpush.msra.mxu0 %v1239
      %1375 = vmatpush.msra.mxu0 %v1222
      %1376 = vmatpush.msra.mxu0 %v1221
      %1377 = vmatpush.msra.mxu0 %v1204
      %1378 = vmatpush.msra.mxu0 %v1203
      %1379 = vmatpush.msra.mxu0 %v1186
      %1380 = vmatpush.msra.mxu0 %v1185
      %1381 = vmatpush.msra.mxu0 %v1168
      %1382 = vmatpush.msra.mxu0 %v1167
      %1383 = vmatpush.msra.mxu0 %v1150
      %1384 = vmatpush.msra.mxu0 %v1149
      %1385 = vmatpush.msra.mxu0 %v1132
      %1386 = vmatpush.msra.mxu0 %v1131
      %1387 = vmatpush.msra.mxu0 %v1114
      %1388 = vmatpush.msra.mxu0 %v1111
      %1389 = vmatmul.f32.gmra.mxu0 %v1259
      %v1390 = vpop.f32.mrf.mxu0
      %v1391 = vadd.f32 %v1268, %v1390
      %1392 = vmatmul.f32.gmra.mxu0 %v1261
      %v1393 = vpop.f32.mrf.mxu0
      %v1394 = vadd.f32 %v1273, %v1393
      %1395 = vdwg.mxu0
      %1396 = vmatpush.msra.mxu0 0.0
      %1397 = vmatpush.msra.mxu0 0.0
      %1398 = vmatpush.msra.mxu0 0.0
      %1399 = vmatpush.msra.mxu0 0.0
      %1400 = vmatpush.msra.mxu0 0.0
      %1401 = vmatpush.msra.mxu0 0.0
      %1402 = vmatpush.msra.mxu0 0.0
      %1403 = vmatpush.msra.mxu0 0.0
      %1404 = vmatpush.msra.mxu0 0.0
      %1405 = vmatpush.msra.mxu0 0.0
      %1406 = vmatpush.msra.mxu0 0.0
      %1407 = vmatpush.msra.mxu0 0.0
      %1408 = vmatpush.msra.mxu0 0.0
      %1409 = vmatpush.msra.mxu0 0.0
      %1410 = vmatpush.msra.mxu0 %v1258
      %1411 = vmatpush.msra.mxu0 %v1257
      %1412 = vmatmul.f32.gmra.mxu0 %v1276
      %v1413 = vpop.f32.mrf.mxu0
      %v1414 = vadd.f32 %v1391, %v1413
      %1415 = vmatmul.f32.gmra.mxu0 %v1279
      %v1416 = vpop.f32.mrf.mxu0
      %v1417 = vadd.f32 %v1394, %v1416
      %1418 = vdwg.mxu0
      %v1419 = vmax.f32 %v1322, 0.0
      %v1420 = vmax.f32 %v1368, 0.0
      %v1421 = vmax.f32 %v1414, 0.0
      %v1422 = vmax.f32 %v1325, 0.0
      %v1423 = vmax.f32 %v1371, 0.0
      %v1424 = vmax.f32 %v1417, 0.0
      %1425 = vrot.lane.b32.xlu0 %v1419, 19
      %v1426 = vpop.permute.xlu0 %1425
      %1427 = vrot.lane.b32.xlu0 %v1422, 19
      %v1428 = vpop.permute.xlu0 %1427
      %1429 = vrot.lane.b32.xlu0 %v1420, 19
      %v1430 = vpop.permute.xlu0 %1429
      %1431 = vrot.lane.b32.xlu0 %v1423, 19
      %v1432 = vpop.permute.xlu0 %1431
      %1433 = vrot.lane.b32.xlu0 %v1421, 19
      %v1434 = vpop.permute.xlu0 %1433
      %1435 = vrot.lane.b32.xlu0 %v1424, 19
      %v1436 = vpop.permute.xlu0 %1435
      %v1437 = vsel %vm760, %v1430, %v1434
      %v1438 = vsel %vm760, %v1432, %v1436
      %v1439 = vsel %vm760, %v1426, %v1430
      %v1440 = vsel %vm760, %v1428, %v1432
      %v1441 = vsel %vm760, %v1434, %v1426
      %v1442 = vsel %vm760, %v1436, %v1428
      %v1443 = vmul.f32 %v1441, %v768
      %v1444 = vmul.f32 %v1439, %v769
      %v1445 = vmul.f32 %v1437, %v770
      %v1446 = vmul.f32 %v1442, %v768
      %v1447 = vmul.f32 %v1440, %v769
      %v1448 = vmul.f32 %v1438, %v770
      %1449 = vrot.lane.b32.xlu0 %v1443, 127
      %v1450 = vpop.permute.xlu0 %1449
      %1451 = vrot.lane.b32.xlu0 %v1446, 127
      %v1452 = vpop.permute.xlu0 %1451
      %1453 = vrot.lane.b32.xlu0 %v1444, 127
      %v1454 = vpop.permute.xlu0 %1453
      %1455 = vrot.lane.b32.xlu0 %v1447, 127
      %v1456 = vpop.permute.xlu0 %1455
      %1457 = vrot.lane.b32.xlu0 %v1445, 127
      %v1458 = vpop.permute.xlu0 %1457
      %1459 = vrot.lane.b32.xlu0 %v1448, 127
      %v1460 = vpop.permute.xlu0 %1459
      %v1461 = vsel %vm578, %v1454, %v1458
      %v1462 = vsel %vm578, %v1456, %v1460
      %v1463 = vsel %vm578, %v1450, %v1454
      %v1464 = vsel %vm578, %v1452, %v1456
      %v1465 = vsel %vm578, %v1458, %v1450
      %v1466 = vsel %vm578, %v1460, %v1452
      %1467 = vrot.lane.b32.xlu0 %v1443, 126
      %v1468 = vpop.permute.xlu0 %1467
      %1469 = vrot.lane.b32.xlu0 %v1446, 126
      %v1470 = vpop.permute.xlu0 %1469
      %1471 = vrot.lane.b32.xlu0 %v1444, 126
      %v1472 = vpop.permute.xlu0 %1471
      %1473 = vrot.lane.b32.xlu0 %v1447, 126
      %v1474 = vpop.permute.xlu0 %1473
      %1475 = vrot.lane.b32.xlu0 %v1445, 126
      %v1476 = vpop.permute.xlu0 %1475
      %1477 = vrot.lane.b32.xlu0 %v1448, 126
      %v1478 = vpop.permute.xlu0 %1477
      %v1479 = vsel %vm588, %v1472, %v1476
      %v1480 = vsel %vm588, %v1474, %v1478
      %v1481 = vsel %vm588, %v1468, %v1472
      %v1482 = vsel %vm588, %v1470, %v1474
      %v1483 = vsel %vm588, %v1476, %v1468
      %v1484 = vsel %vm588, %v1478, %v1470
      %1485 = vrot.lane.b32.xlu0 %v1443, 110
      %v1486 = vpop.permute.xlu0 %1485
      %1487 = vrot.lane.b32.xlu0 %v1446, 110
      %v1488 = vpop.permute.xlu0 %1487
      %1489 = vrot.lane.b32.xlu0 %v1444, 110
      %v1490 = vpop.permute.xlu0 %1489
      %1491 = vrot.lane.b32.xlu0 %v1447, 110
      %v1492 = vpop.permute.xlu0 %1491
      %1493 = vrot.lane.b32.xlu0 %v1445, 110
      %v1494 = vpop.permute.xlu0 %1493
      %1495 = vrot.lane.b32.xlu0 %v1448, 110
      %v1496 = vpop.permute.xlu0 %1495
      %v1497 = vsel %vm598, %v1490, %v1494
      %v1498 = vsel %vm598, %v1492, %v1496
      %v1499 = vsel %vm598, %v1486, %v1490
      %v1500 = vsel %vm598, %v1488, %v1492
      %v1501 = vsel %vm598, %v1494, %v1486
      %v1502 = vsel %vm598, %v1496, %v1488
      %1503 = vrot.lane.b32.xlu0 %v1443, 109
      %v1504 = vpop.permute.xlu0 %1503
      %1505 = vrot.lane.b32.xlu0 %v1446, 109
      %v1506 = vpop.permute.xlu0 %1505
      %1507 = vrot.lane.b32.xlu0 %v1444, 109
      %v1508 = vpop.permute.xlu0 %1507
      %1509 = vrot.lane.b32.xlu0 %v1447, 109
      %v1510 = vpop.permute.xlu0 %1509
      %1511 = vrot.lane.b32.xlu0 %v1445, 109
      %v1512 = vpop.permute.xlu0 %1511
      %1513 = vrot.lane.b32.xlu0 %v1448, 109
      %v1514 = vpop.permute.xlu0 %1513
      %v1515 = vsel %vm608, %v1508, %v1512
      %v1516 = vsel %vm608, %v1510, %v1514
      %v1517 = vsel %vm608, %v1504, %v1508
      %v1518 = vsel %vm608, %v1506, %v1510
      %v1519 = vsel %vm608, %v1512, %v1504
      %v1520 = vsel %vm608, %v1514, %v1506
      %1521 = vrot.lane.b32.xlu0 %v1443, 108
      %v1522 = vpop.permute.xlu0 %1521
      %1523 = vrot.lane.b32.xlu0 %v1446, 108
      %v1524 = vpop.permute.xlu0 %1523
      %1525 = vrot.lane.b32.xlu0 %v1444, 108
      %v1526 = vpop.permute.xlu0 %1525
      %1527 = vrot.lane.b32.xlu0 %v1447, 108
      %v1528 = vpop.permute.xlu0 %1527
      %1529 = vrot.lane.b32.xlu0 %v1445, 108
      %v1530 = vpop.permute.xlu0 %1529
      %1531 = vrot.lane.b32.xlu0 %v1448, 108
      %v1532 = vpop.permute.xlu0 %1531
      %v1533 = vsel %vm618, %v1526, %v1530
      %v1534 = vsel %vm618, %v1528, %v1532
      %v1535 = vsel %vm618, %v1522, %v1526
      %v1536 = vsel %vm618, %v1524, %v1528
      %v1537 = vsel %vm618, %v1530, %v1522
      %v1538 = vsel %vm618, %v1532, %v1524
      %1539 = vrot.lane.b32.xlu0 %v1443, 92
      %v1540 = vpop.permute.xlu0 %1539
      %1541 = vrot.lane.b32.xlu0 %v1446, 92
      %v1542 = vpop.permute.xlu0 %1541
      %1543 = vrot.lane.b32.xlu0 %v1444, 92
      %v1544 = vpop.permute.xlu0 %1543
      %1545 = vrot.lane.b32.xlu0 %v1447, 92
      %v1546 = vpop.permute.xlu0 %1545
      %1547 = vrot.lane.b32.xlu0 %v1445, 92
      %v1548 = vpop.permute.xlu0 %1547
      %1549 = vrot.lane.b32.xlu0 %v1448, 92
      %v1550 = vpop.permute.xlu0 %1549
      %v1551 = vsel %vm628, %v1544, %v1548
      %v1552 = vsel %vm628, %v1546, %v1550
      %v1553 = vsel %vm628, %v1540, %v1544
      %v1554 = vsel %vm628, %v1542, %v1546
      %v1555 = vsel %vm628, %v1548, %v1540
      %v1556 = vsel %vm628, %v1550, %v1542
      %1557 = vrot.lane.b32.xlu0 %v1443, 91
      %v1558 = vpop.permute.xlu0 %1557
      %1559 = vrot.lane.b32.xlu0 %v1446, 91
      %v1560 = vpop.permute.xlu0 %1559
      %1561 = vrot.lane.b32.xlu0 %v1444, 91
      %v1562 = vpop.permute.xlu0 %1561
      %1563 = vrot.lane.b32.xlu0 %v1447, 91
      %v1564 = vpop.permute.xlu0 %1563
      %1565 = vrot.lane.b32.xlu0 %v1445, 91
      %v1566 = vpop.permute.xlu0 %1565
      %1567 = vrot.lane.b32.xlu0 %v1448, 91
      %v1568 = vpop.permute.xlu0 %1567
      %v1569 = vsel %vm638, %v1562, %v1566
      %v1570 = vsel %vm638, %v1564, %v1568
      %v1571 = vsel %vm638, %v1558, %v1562
      %v1572 = vsel %vm638, %v1560, %v1564
      %v1573 = vsel %vm638, %v1566, %v1558
      %v1574 = vsel %vm638, %v1568, %v1560
      %1575 = vrot.lane.b32.xlu0 %v1443, 90
      %v1576 = vpop.permute.xlu0 %1575
      %1577 = vrot.lane.b32.xlu0 %v1446, 90
      %v1578 = vpop.permute.xlu0 %1577
      %1579 = vrot.lane.b32.xlu0 %v1444, 90
      %v1580 = vpop.permute.xlu0 %1579
      %1581 = vrot.lane.b32.xlu0 %v1447, 90
      %v1582 = vpop.permute.xlu0 %1581
      %1583 = vrot.lane.b32.xlu0 %v1445, 90
      %v1584 = vpop.permute.xlu0 %1583
      %1585 = vrot.lane.b32.xlu0 %v1448, 90
      %v1586 = vpop.permute.xlu0 %1585
      %v1587 = vsel %vm648, %v1580, %v1584
      %v1588 = vsel %vm648, %v1582, %v1586
      %v1589 = vsel %vm648, %v1576, %v1580
      %v1590 = vsel %vm648, %v1578, %v1582
      %v1591 = vsel %vm648, %v1584, %v1576
      %v1592 = vsel %vm648, %v1586, %v1578
      %v1593 = vld [vmem:[%s9] sm:$0xff]
      %v1594 = vld [vmem:[%s9 + $0x8] sm:$0xff]
      %v1595 = vld [vmem:[%s9 + $0x10] sm:$0xff]
      %v1596 = vld [vmem:[%s9 + $0x18] sm:$0xff]
      %v1597 = vld [vmem:[%s10] sm:$0xff]
      %v1598 = vld [vmem:[%s10 + $0x8] sm:$0xff]
      %1600 = vset.pattern.permute.xlu0 0
      %1601 = vperm.xlu0 %1600, %v1597
      %v1602 = vpop.permute.xlu0 %1601
      %1605 = vset.pattern.permute.xlu0 0
      %1606 = vperm.xlu0 %1605, %v1598
      %v1607 = vpop.permute.xlu0 %1606
      %v1610 = vsel %vm940, %v1594, 0
      %v1613 = vsel %vm940, %v1596, 0
      %1615 = vmatpush.msra.mxu0 %v1572
      %1616 = vmatpush.msra.mxu0 %v1571
      %1617 = vmatpush.msra.mxu0 %v1554
      %1618 = vmatpush.msra.mxu0 %v1553
      %1619 = vmatpush.msra.mxu0 %v1536
      %1620 = vmatpush.msra.mxu0 %v1535
      %1621 = vmatpush.msra.mxu0 %v1518
      %1622 = vmatpush.msra.mxu0 %v1517
      %1623 = vmatpush.msra.mxu0 %v1500
      %1624 = vmatpush.msra.mxu0 %v1499
      %1625 = vmatpush.msra.mxu0 %v1482
      %1626 = vmatpush.msra.mxu0 %v1481
      %1627 = vmatpush.msra.mxu0 %v1464
      %1628 = vmatpush.msra.mxu0 %v1463
      %1629 = vmatpush.msra.mxu0 %v1446
      %1630 = vmatpush.msra.mxu0 %v1443
      %1631 = vmatmul.f32.gmra.mxu0 %v1593
      %v1632 = vpop.f32.mrf.mxu0
      %v1633 = vadd.f32 %v1602, %v1632
      %1634 = vmatmul.f32.gmra.mxu0 %v1595
      %v1635 = vpop.f32.mrf.mxu0
      %v1636 = vadd.f32 %v1607, %v1635
      %1637 = vdwg.mxu0
      %1638 = vmatpush.msra.mxu0 0.0
      %1639 = vmatpush.msra.mxu0 0.0
      %1640 = vmatpush.msra.mxu0 0.0
      %1641 = vmatpush.msra.mxu0 0.0
      %1642 = vmatpush.msra.mxu0 0.0
      %1643 = vmatpush.msra.mxu0 0.0
      %1644 = vmatpush.msra.mxu0 0.0
      %1645 = vmatpush.msra.mxu0 0.0
      %1646 = vmatpush.msra.mxu0 0.0
      %1647 = vmatpush.msra.mxu0 0.0
      %1648 = vmatpush.msra.mxu0 0.0
      %1649 = vmatpush.msra.mxu0 0.0
      %1650 = vmatpush.msra.mxu0 0.0
      %1651 = vmatpush.msra.mxu0 0.0
      %1652 = vmatpush.msra.mxu0 %v1590
      %1653 = vmatpush.msra.mxu0 %v1589
      %1654 = vmatmul.f32.gmra.mxu0 %v1610
      %v1655 = vpop.f32.mrf.mxu0
      %v1656 = vadd.f32 %v1633, %v1655
      %1657 = vmatmul.f32.gmra.mxu0 %v1613
      %v1658 = vpop.f32.mrf.mxu0
      %v1659 = vadd.f32 %v1636, %v1658
      %1660 = vdwg.mxu0
      %1661 = vmatpush.msra.mxu0 %v1570
      %1662 = vmatpush.msra.mxu0 %v1569
      %1663 = vmatpush.msra.mxu0 %v1552
      %1664 = vmatpush.msra.mxu0 %v1551
      %1665 = vmatpush.msra.mxu0 %v1534
      %1666 = vmatpush.msra.mxu0 %v1533
      %1667 = vmatpush.msra.mxu0 %v1516
      %1668 = vmatpush.msra.mxu0 %v1515
      %1669 = vmatpush.msra.mxu0 %v1498
      %1670 = vmatpush.msra.mxu0 %v1497
      %1671 = vmatpush.msra.mxu0 %v1480
      %1672 = vmatpush.msra.mxu0 %v1479
      %1673 = vmatpush.msra.mxu0 %v1462
      %1674 = vmatpush.msra.mxu0 %v1461
      %1675 = vmatpush.msra.mxu0 %v1447
      %1676 = vmatpush.msra.mxu0 %v1444
      %1677 = vmatmul.f32.gmra.mxu0 %v1593
      %v1678 = vpop.f32.mrf.mxu0
      %v1679 = vadd.f32 %v1602, %v1678
      %1680 = vmatmul.f32.gmra.mxu0 %v1595
      %v1681 = vpop.f32.mrf.mxu0
      %v1682 = vadd.f32 %v1607, %v1681
      %1683 = vdwg.mxu0
      %1684 = vmatpush.msra.mxu0 0.0
      %1685 = vmatpush.msra.mxu0 0.0
      %1686 = vmatpush.msra.mxu0 0.0
      %1687 = vmatpush.msra.mxu0 0.0
      %1688 = vmatpush.msra.mxu0 0.0
      %1689 = vmatpush.msra.mxu0 0.0
      %1690 = vmatpush.msra.mxu0 0.0
      %1691 = vmatpush.msra.mxu0 0.0
      %1692 = vmatpush.msra.mxu0 0.0
      %1693 = vmatpush.msra.mxu0 0.0
      %1694 = vmatpush.msra.mxu0 0.0
      %1695 = vmatpush.msra.mxu0 0.0
      %1696 = vmatpush.msra.mxu0 0.0
      %1697 = vmatpush.msra.mxu0 0.0
      %1698 = vmatpush.msra.mxu0 %v1588
      %1699 = vmatpush.msra.mxu0 %v1587
      %1700 = vmatmul.f32.gmra.mxu0 %v1610
      %v1701 = vpop.f32.mrf.mxu0
      %v1702 = vadd.f32 %v1679, %v1701
      %1703 = vmatmul.f32.gmra.mxu0 %v1613
      %v1704 = vpop.f32.mrf.mxu0
      %v1705 = vadd.f32 %v1682, %v1704
      %1706 = vdwg.mxu0
      %1707 = vmatpush.msra.mxu0 %v1574
      %1708 = vmatpush.msra.mxu0 %v1573
      %1709 = vmatpush.msra.mxu0 %v1556
      %1710 = vmatpush.msra.mxu0 %v1555
      %1711 = vmatpush.msra.mxu0 %v1538
      %1712 = vmatpush.msra.mxu0 %v1537
      %1713 = vmatpush.msra.mxu0 %v1520
      %1714 = vmatpush.msra.mxu0 %v1519
      %1715 = vmatpush.msra.mxu0 %v1502
      %1716 = vmatpush.msra.mxu0 %v1501
      %1717 = vmatpush.msra.mxu0 %v1484
      %1718 = vmatpush.msra.mxu0 %v1483
      %1719 = vmatpush.msra.mxu0 %v1466
      %1720 = vmatpush.msra.mxu0 %v1465
      %1721 = vmatpush.msra.mxu0 %v1448
      %1722 = vmatpush.msra.mxu0 %v1445
      %1723 = vmatmul.f32.gmra.mxu0 %v1593
      %v1724 = vpop.f32.mrf.mxu0
      %v1725 = vadd.f32 %v1602, %v1724
      %1726 = vmatmul.f32.gmra.mxu0 %v1595
      %v1727 = vpop.f32.mrf.mxu0
      %v1728 = vadd.f32 %v1607, %v1727
      %1729 = vdwg.mxu0
      %1730 = vmatpush.msra.mxu0 0.0
      %1731 = vmatpush.msra.mxu0 0.0
      %1732 = vmatpush.msra.mxu0 0.0
      %1733 = vmatpush.msra.mxu0 0.0
      %1734 = vmatpush.msra.mxu0 0.0
      %1735 = vmatpush.msra.mxu0 0.0
      %1736 = vmatpush.msra.mxu0 0.0
      %1737 = vmatpush.msra.mxu0 0.0
      %1738 = vmatpush.msra.mxu0 0.0
      %1739 = vmatpush.msra.mxu0 0.0
      %1740 = vmatpush.msra.mxu0 0.0
      %1741 = vmatpush.msra.mxu0 0.0
      %1742 = vmatpush.msra.mxu0 0.0
      %1743 = vmatpush.msra.mxu0 0.0
      %1744 = vmatpush.msra.mxu0 %v1592
      %1745 = vmatpush.msra.mxu0 %v1591
      %1746 = vmatmul.f32.gmra.mxu0 %v1610
      %v1747 = vpop.f32.mrf.mxu0
      %v1748 = vadd.f32 %v1725, %v1747
      %1749 = vmatmul.f32.gmra.mxu0 %v1613
      %v1750 = vpop.f32.mrf.mxu0
      %v1751 = vadd.f32 %v1728, %v1750
      %1752 = vdwg.mxu0
      %v1753 = vmax.f32 %v1656, 0.0
      %v1754 = vmax.f32 %v1702, 0.0
      %v1755 = vmax.f32 %v1748, 0.0
      %v1756 = vmax.f32 %v1659, 0.0
      %v1757 = vmax.f32 %v1705, 0.0
      %v1758 = vmax.f32 %v1751, 0.0
      %v1759 = vld [vmem:[%s560] sm:$0xff]
      %1761 = vset.pattern.permute.xlu0 0
      %1762 = vperm.xlu0 %1761, %v1759
      %v1763 = vpop.permute.xlu0 %1762
      %v1765 = vmul.f32 %v1763, %v768
      %v1766 = vmul.f32 %v1763, %v769
      %v1767 = vmul.f32 %v1763, %v770
      %1768 = vrot.lane.b32.xlu0 %v1753, 19
      %v1769 = vpop.permute.xlu0 %1768
      %1770 = vrot.lane.b32.xlu0 %v1756, 19
      %v1771 = vpop.permute.xlu0 %1770
      %1772 = vrot.lane.b32.xlu0 %v1754, 19
      %v1773 = vpop.permute.xlu0 %1772
      %1774 = vrot.lane.b32.xlu0 %v1757, 19
      %v1775 = vpop.permute.xlu0 %1774
      %1776 = vrot.lane.b32.xlu0 %v1755, 19
      %v1777 = vpop.permute.xlu0 %1776
      %1778 = vrot.lane.b32.xlu0 %v1758, 19
      %v1779 = vpop.permute.xlu0 %1778
      %v1780 = vsel %vm760, %v1773, %v1777
      %v1781 = vsel %vm760, %v1775, %v1779
      %v1782 = vsel %vm760, %v1769, %v1773
      %v1783 = vsel %vm760, %v1771, %v1775
      %v1784 = vsel %vm760, %v1777, %v1769
      %v1785 = vsel %vm760, %v1779, %v1771
      %v1786 = vmul.f32 %v1784, %v768
      %v1787 = vmul.f32 %v1782, %v769
      %v1788 = vmul.f32 %v1780, %v770
      %v1789 = vmul.f32 %v1785, %v768
      %v1790 = vmul.f32 %v1783, %v769
      %v1791 = vmul.f32 %v1781, %v770
      %1792 = vrot.lane.b32.xlu0 %v1765, 127
      %v1793 = vpop.permute.xlu0 %1792
      %1794 = vrot.lane.b32.xlu0 %v1786, 127
      %v1795 = vpop.permute.xlu0 %1794
      %1796 = vrot.lane.b32.xlu0 %v1789, 127
      %v1797 = vpop.permute.xlu0 %1796
      %1798 = vrot.lane.b32.xlu0 %v1766, 127
      %v1799 = vpop.permute.xlu0 %1798
      %1800 = vrot.lane.b32.xlu0 %v1787, 127
      %v1801 = vpop.permute.xlu0 %1800
      %1802 = vrot.lane.b32.xlu0 %v1790, 127
      %v1803 = vpop.permute.xlu0 %1802
      %1804 = vrot.lane.b32.xlu0 %v1767, 127
      %v1805 = vpop.permute.xlu0 %1804
      %1806 = vrot.lane.b32.xlu0 %v1788, 127
      %v1807 = vpop.permute.xlu0 %1806
      %1808 = vrot.lane.b32.xlu0 %v1791, 127
      %v1809 = vpop.permute.xlu0 %1808
      %v1810 = vsel %vm578, %v1799, %v1805
      %v1811 = vsel %vm578, %v1801, %v1807
      %v1812 = vsel %vm578, %v1803, %v1809
      %v1813 = vsel %vm578, %v1793, %v1799
      %v1814 = vsel %vm578, %v1795, %v1801
      %v1815 = vsel %vm578, %v1797, %v1803
      %v1816 = vsel %vm578, %v1805, %v1793
      %v1817 = vsel %vm578, %v1807, %v1795
      %v1818 = vsel %vm578, %v1809, %v1797
      %1819 = vrot.lane.b32.xlu0 %v1765, 126
      %v1820 = vpop.permute.xlu0 %1819
      %1821 = vrot.lane.b32.xlu0 %v1786, 126
      %v1822 = vpop.permute.xlu0 %1821
      %1823 = vrot.lane.b32.xlu0 %v1789, 126
      %v1824 = vpop.permute.xlu0 %1823
      %1825 = vrot.lane.b32.xlu0 %v1766, 126
      %v1826 = vpop.permute.xlu0 %1825
      %1827 = vrot.lane.b32.xlu0 %v1787, 126
      %v1828 = vpop.permute.xlu0 %1827
      %1829 = vrot.lane.b32.xlu0 %v1790, 126
      %v1830 = vpop.permute.xlu0 %1829
      %1831 = vrot.lane.b32.xlu0 %v1767, 126
      %v1832 = vpop.permute.xlu0 %1831
      %1833 = vrot.lane.b32.xlu0 %v1788, 126
      %v1834 = vpop.permute.xlu0 %1833
      %1835 = vrot.lane.b32.xlu0 %v1791, 126
      %v1836 = vpop.permute.xlu0 %1835
      %v1837 = vsel %vm588, %v1826, %v1832
      %v1838 = vsel %vm588, %v1828, %v1834
      %v1839 = vsel %vm588, %v1830, %v1836
      %v1840 = vsel %vm588, %v1820, %v1826
      %v1841 = vsel %vm588, %v1822, %v1828
      %v1842 = vsel %vm588, %v1824, %v1830
      %v1843 = vsel %vm588, %v1832, %v1820
      %v1844 = vsel %vm588, %v1834, %v1822
      %v1845 = vsel %vm588, %v1836, %v1824
      %1846 = vrot.lane.b32.xlu0 %v1765, 110
      %v1847 = vpop.permute.xlu0 %1846
      %1848 = vrot.lane.b32.xlu0 %v1786, 110
      %v1849 = vpop.permute.xlu0 %1848
      %1850 = vrot.lane.b32.xlu0 %v1789, 110
      %v1851 = vpop.permute.xlu0 %1850
      %1852 = vrot.lane.b32.xlu0 %v1766, 110
      %v1853 = vpop.permute.xlu0 %1852
      %1854 = vrot.lane.b32.xlu0 %v1787, 110
      %v1855 = vpop.permute.xlu0 %1854
      %1856 = vrot.lane.b32.xlu0 %v1790, 110
      %v1857 = vpop.permute.xlu0 %1856
      %1858 = vrot.lane.b32.xlu0 %v1767, 110
      %v1859 = vpop.permute.xlu0 %1858
      %1860 = vrot.lane.b32.xlu0 %v1788, 110
      %v1861 = vpop.permute.xlu0 %1860
      %1862 = vrot.lane.b32.xlu0 %v1791, 110
      %v1863 = vpop.permute.xlu0 %1862
      %v1864 = vsel %vm598, %v1853, %v1859
      %v1865 = vsel %vm598, %v1855, %v1861
      %v1866 = vsel %vm598, %v1857, %v1863
      %v1867 = vsel %vm598, %v1847, %v1853
      %v1868 = vsel %vm598, %v1849, %v1855
      %v1869 = vsel %vm598, %v1851, %v1857
      %v1870 = vsel %vm598, %v1859, %v1847
      %v1871 = vsel %vm598, %v1861, %v1849
      %v1872 = vsel %vm598, %v1863, %v1851
      %1873 = vrot.lane.b32.xlu0 %v1765, 109
      %v1874 = vpop.permute.xlu0 %1873
      %1875 = vrot.lane.b32.xlu0 %v1786, 109
      %v1876 = vpop.permute.xlu0 %1875
      %1877 = vrot.lane.b32.xlu0 %v1789, 109
      %v1878 = vpop.permute.xlu0 %1877
      %1879 = vrot.lane.b32.xlu0 %v1766, 109
      %v1880 = vpop.permute.xlu0 %1879
      %1881 = vrot.lane.b32.xlu0 %v1787, 109
      %v1882 = vpop.permute.xlu0 %1881
      %1883 = vrot.lane.b32.xlu0 %v1790, 109
      %v1884 = vpop.permute.xlu0 %1883
      %1885 = vrot.lane.b32.xlu0 %v1767, 109
      %v1886 = vpop.permute.xlu0 %1885
      %1887 = vrot.lane.b32.xlu0 %v1788, 109
      %v1888 = vpop.permute.xlu0 %1887
      %1889 = vrot.lane.b32.xlu0 %v1791, 109
      %v1890 = vpop.permute.xlu0 %1889
      %v1891 = vsel %vm608, %v1880, %v1886
      %v1892 = vsel %vm608, %v1882, %v1888
      %v1893 = vsel %vm608, %v1884, %v1890
      %v1894 = vsel %vm608, %v1874, %v1880
      %v1895 = vsel %vm608, %v1876, %v1882
      %v1896 = vsel %vm608, %v1878, %v1884
      %v1897 = vsel %vm608, %v1886, %v1874
      %v1898 = vsel %vm608, %v1888, %v1876
      %v1899 = vsel %vm608, %v1890, %v1878
      %1900 = vrot.lane.b32.xlu0 %v1765, 108
      %v1901 = vpop.permute.xlu0 %1900
      %1902 = vrot.lane.b32.xlu0 %v1786, 108
      %v1903 = vpop.permute.xlu0 %1902
      %1904 = vrot.lane.b32.xlu0 %v1789, 108
      %v1905 = vpop.permute.xlu0 %1904
      %1906 = vrot.lane.b32.xlu0 %v1766, 108
      %v1907 = vpop.permute.xlu0 %1906
      %1908 = vrot.lane.b32.xlu0 %v1787, 108
      %v1909 = vpop.permute.xlu0 %1908
      %1910 = vrot.lane.b32.xlu0 %v1790, 108
      %v1911 = vpop.permute.xlu0 %1910
      %1912 = vrot.lane.b32.xlu0 %v1767, 108
      %v1913 = vpop.permute.xlu0 %1912
      %1914 = vrot.lane.b32.xlu0 %v1788, 108
      %v1915 = vpop.permute.xlu0 %1914
      %1916 = vrot.lane.b32.xlu0 %v1791, 108
      %v1917 = vpop.permute.xlu0 %1916
      %v1918 = vsel %vm618, %v1907, %v1913
      %v1919 = vsel %vm618, %v1909, %v1915
      %v1920 = vsel %vm618, %v1911, %v1917
      %v1921 = vsel %vm618, %v1901, %v1907
      %v1922 = vsel %vm618, %v1903, %v1909
      %v1923 = vsel %vm618, %v1905, %v1911
      %v1924 = vsel %vm618, %v1913, %v1901
      %v1925 = vsel %vm618, %v1915, %v1903
      %v1926 = vsel %vm618, %v1917, %v1905
      %1927 = vrot.lane.b32.xlu0 %v1765, 92
      %v1928 = vpop.permute.xlu0 %1927
      %1929 = vrot.lane.b32.xlu0 %v1786, 92
      %v1930 = vpop.permute.xlu0 %1929
      %1931 = vrot.lane.b32.xlu0 %v1789, 92
      %v1932 = vpop.permute.xlu0 %1931
      %1933 = vrot.lane.b32.xlu0 %v1766, 92
      %v1934 = vpop.permute.xlu0 %1933
      %1935 = vrot.lane.b32.xlu0 %v1787, 92
      %v1936 = vpop.permute.xlu0 %1935
      %1937 = vrot.lane.b32.xlu0 %v1790, 92
      %v1938 = vpop.permute.xlu0 %1937
      %1939 = vrot.lane.b32.xlu0 %v1767, 92
      %v1940 = vpop.permute.xlu0 %1939
      %1941 = vrot.lane.b32.xlu0 %v1788, 92
      %v1942 = vpop.permute.xlu0 %1941
      %1943 = vrot.lane.b32.xlu0 %v1791, 92
      %v1944 = vpop.permute.xlu0 %1943
      %v1945 = vsel %vm628, %v1934, %v1940
      %v1946 = vsel %vm628, %v1936, %v1942
      %v1947 = vsel %vm628, %v1938, %v1944
      %v1948 = vsel %vm628, %v1928, %v1934
      %v1949 = vsel %vm628, %v1930, %v1936
      %v1950 = vsel %vm628, %v1932, %v1938
      %v1951 = vsel %vm628, %v1940, %v1928
      %v1952 = vsel %vm628, %v1942, %v1930
      %v1953 = vsel %vm628, %v1944, %v1932
      %1954 = vrot.lane.b32.xlu0 %v1765, 91
      %v1955 = vpop.permute.xlu0 %1954
      %1956 = vrot.lane.b32.xlu0 %v1786, 91
      %v1957 = vpop.permute.xlu0 %1956
      %1958 = vrot.lane.b32.xlu0 %v1789, 91
      %v1959 = vpop.permute.xlu0 %1958
      %1960 = vrot.lane.b32.xlu0 %v1766, 91
      %v1961 = vpop.permute.xlu0 %1960
      %1962 = vrot.lane.b32.xlu0 %v1787, 91
      %v1963 = vpop.permute.xlu0 %1962
      %1964 = vrot.lane.b32.xlu0 %v1790, 91
      %v1965 = vpop.permute.xlu0 %1964
      %1966 = vrot.lane.b32.xlu0 %v1767, 91
      %v1967 = vpop.permute.xlu0 %1966
      %1968 = vrot.lane.b32.xlu0 %v1788, 91
      %v1969 = vpop.permute.xlu0 %1968
      %1970 = vrot.lane.b32.xlu0 %v1791, 91
      %v1971 = vpop.permute.xlu0 %1970
      %v1972 = vsel %vm638, %v1961, %v1967
      %v1973 = vsel %vm638, %v1963, %v1969
      %v1974 = vsel %vm638, %v1965, %v1971
      %v1975 = vsel %vm638, %v1955, %v1961
      %v1976 = vsel %vm638, %v1957, %v1963
      %v1977 = vsel %vm638, %v1959, %v1965
      %v1978 = vsel %vm638, %v1967, %v1955
      %v1979 = vsel %vm638, %v1969, %v1957
      %v1980 = vsel %vm638, %v1971, %v1959
      %1981 = vrot.lane.b32.xlu0 %v1765, 90
      %v1982 = vpop.permute.xlu0 %1981
      %1983 = vrot.lane.b32.xlu0 %v1786, 90
      %v1984 = vpop.permute.xlu0 %1983
      %1985 = vrot.lane.b32.xlu0 %v1789, 90
      %v1986 = vpop.permute.xlu0 %1985
      %1987 = vrot.lane.b32.xlu0 %v1766, 90
      %v1988 = vpop.permute.xlu0 %1987
      %1989 = vrot.lane.b32.xlu0 %v1787, 90
      %v1990 = vpop.permute.xlu0 %1989
      %1991 = vrot.lane.b32.xlu0 %v1790, 90
      %v1992 = vpop.permute.xlu0 %1991
      %1993 = vrot.lane.b32.xlu0 %v1767, 90
      %v1994 = vpop.permute.xlu0 %1993
      %1995 = vrot.lane.b32.xlu0 %v1788, 90
      %v1996 = vpop.permute.xlu0 %1995
      %1997 = vrot.lane.b32.xlu0 %v1791, 90
      %v1998 = vpop.permute.xlu0 %1997
      %v1999 = vsel %vm648, %v1988, %v1994
      %v2000 = vsel %vm648, %v1990, %v1996
      %v2001 = vsel %vm648, %v1992, %v1998
      %v2002 = vsel %vm648, %v1982, %v1988
      %v2003 = vsel %vm648, %v1984, %v1990
      %v2004 = vsel %vm648, %v1986, %v1992
      %v2005 = vsel %vm648, %v1994, %v1982
      %v2006 = vsel %vm648, %v1996, %v1984
      %v2007 = vsel %vm648, %v1998, %v1986
      %v2008 = vld [vmem:[%s11] sm:$0xff]
      %v2009 = vld [vmem:[%s11 + $0x8] sm:$0xff]
      %v2010 = vld [vmem:[%s11 + $0x10] sm:$0xff]
      %v2011 = vld [vmem:[%s11 + $0x18] sm:$0xff]
      %v2012 = vld [vmem:[%s12] sm:$0xff]
      %v2013 = vld [vmem:[%s12 + $0x8] sm:$0xff]
      %2015 = vset.pattern.permute.xlu0 0
      %2016 = vperm.xlu0 %2015, %v2012
      %v2017 = vpop.permute.xlu0 %2016
      %2020 = vset.pattern.permute.xlu0 0
      %2021 = vperm.xlu0 %2020, %v2013
      %v2022 = vpop.permute.xlu0 %2021
      %vm2024 = vcmask 719872
      %v2026 = vsel %vm2024, %v2009, 0
      %v2029 = vsel %vm2024, %v2011, 0
      %2031 = vmatpush.msra.mxu0 %v1921
      %2032 = vmatpush.msra.mxu0 %v1896
      %2033 = vmatpush.msra.mxu0 %v1895
      %2034 = vmatpush.msra.mxu0 %v1894
      %2035 = vmatpush.msra.mxu0 %v1869
      %2036 = vmatpush.msra.mxu0 %v1868
      %2037 = vmatpush.msra.mxu0 %v1867
      %2038 = vmatpush.msra.mxu0 %v1842
      %2039 = vmatpush.msra.mxu0 %v1841
      %2040 = vmatpush.msra.mxu0 %v1840
      %2041 = vmatpush.msra.mxu0 %v1815
      %2042 = vmatpush.msra.mxu0 %v1814
      %2043 = vmatpush.msra.mxu0 %v1813
      %2044 = vmatpush.msra.mxu0 %v1789
      %2045 = vmatpush.msra.mxu0 %v1786
      %2046 = vmatpush.msra.mxu0 %v1765
      %2047 = vmatmul.f32.gmra.mxu0 %v2008
      %v2048 = vpop.f32.mrf.mxu0
      %v2049 = vadd.f32 %v2017, %v2048
      %2050 = vmatmul.f32.gmra.mxu0 %v2010
      %v2051 = vpop.f32.mrf.mxu0
      %v2052 = vadd.f32 %v2022, %v2051
      %2053 = vdwg.mxu0
      %2054 = vmatpush.msra.mxu0 0.0
      %2055 = vmatpush.msra.mxu0 0.0
      %2056 = vmatpush.msra.mxu0 0.0
      %2057 = vmatpush.msra.mxu0 0.0
      %2058 = vmatpush.msra.mxu0 0.0
      %2059 = vmatpush.msra.mxu0 %v2004
      %2060 = vmatpush.msra.mxu0 %v2003
      %2061 = vmatpush.msra.mxu0 %v2002
      %2062 = vmatpush.msra.mxu0 %v1977
      %2063 = vmatpush.msra.mxu0 %v1976
      %2064 = vmatpush.msra.mxu0 %v1975
      %2065 = vmatpush.msra.mxu0 %v1950
      %2066 = vmatpush.msra.mxu0 %v1949
      %2067 = vmatpush.msra.mxu0 %v1948
      %2068 = vmatpush.msra.mxu0 %v1923
      %2069 = vmatpush.msra.mxu0 %v1922
      %2070 = vmatmul.f32.gmra.mxu0 %v2026
      %v2071 = vpop.f32.mrf.mxu0
      %v2072 = vadd.f32 %v2049, %v2071
      %2073 = vmatmul.f32.gmra.mxu0 %v2029
      %v2074 = vpop.f32.mrf.mxu0
      %v2075 = vadd.f32 %v2052, %v2074
      %2076 = vdwg.mxu0
      %2077 = vmatpush.msra.mxu0 %v1918
      %2078 = vmatpush.msra.mxu0 %v1893
      %2079 = vmatpush.msra.mxu0 %v1892
      %2080 = vmatpush.msra.mxu0 %v1891
      %2081 = vmatpush.msra.mxu0 %v1866
      %2082 = vmatpush.msra.mxu0 %v1865
      %2083 = vmatpush.msra.mxu0 %v1864
      %2084 = vmatpush.msra.mxu0 %v1839
      %2085 = vmatpush.msra.mxu0 %v1838
      %2086 = vmatpush.msra.mxu0 %v1837
      %2087 = vmatpush.msra.mxu0 %v1812
      %2088 = vmatpush.msra.mxu0 %v1811
      %2089 = vmatpush.msra.mxu0 %v1810
      %2090 = vmatpush.msra.mxu0 %v1790
      %2091 = vmatpush.msra.mxu0 %v1787
      %2092 = vmatpush.msra.mxu0 %v1766
      %2093 = vmatmul.f32.gmra.mxu0 %v2008
      %v2094 = vpop.f32.mrf.mxu0
      %v2095 = vadd.f32 %v2017, %v2094
      %2096 = vmatmul.f32.gmra.mxu0 %v2010
      %v2097 = vpop.f32.mrf.mxu0
      %v2098 = vadd.f32 %v2022, %v2097
      %2099 = vdwg.mxu0
      %2100 = vmatpush.msra.mxu0 0.0
      %2101 = vmatpush.msra.mxu0 0.0
      %2102 = vmatpush.msra.mxu0 0.0
      %2103 = vmatpush.msra.mxu0 0.0
      %2104 = vmatpush.msra.mxu0 0.0
      %2105 = vmatpush.msra.mxu0 %v2001
      %2106 = vmatpush.msra.mxu0 %v2000
      %2107 = vmatpush.msra.mxu0 %v1999
      %2108 = vmatpush.msra.mxu0 %v1974
      %2109 = vmatpush.msra.mxu0 %v1973
      %2110 = vmatpush.msra.mxu0 %v1972
      %2111 = vmatpush.msra.mxu0 %v1947
      %2112 = vmatpush.msra.mxu0 %v1946
      %2113 = vmatpush.msra.mxu0 %v1945
      %2114 = vmatpush.msra.mxu0 %v1920
      %2115 = vmatpush.msra.mxu0 %v1919
      %2116 = vmatmul.f32.gmra.mxu0 %v2026
      %v2117 = vpop.f32.mrf.mxu0
      %v2118 = vadd.f32 %v2095, %v2117
      %2119 = vmatmul.f32.gmra.mxu0 %v2029
      %v2120 = vpop.f32.mrf.mxu0
      %v2121 = vadd.f32 %v2098, %v2120
      %2122 = vdwg.mxu0
      %2123 = vmatpush.msra.mxu0 %v1924
      %2124 = vmatpush.msra.mxu0 %v1899
      %2125 = vmatpush.msra.mxu0 %v1898
      %2126 = vmatpush.msra.mxu0 %v1897
      %2127 = vmatpush.msra.mxu0 %v1872
      %2128 = vmatpush.msra.mxu0 %v1871
      %2129 = vmatpush.msra.mxu0 %v1870
      %2130 = vmatpush.msra.mxu0 %v1845
      %2131 = vmatpush.msra.mxu0 %v1844
      %2132 = vmatpush.msra.mxu0 %v1843
      %2133 = vmatpush.msra.mxu0 %v1818
      %2134 = vmatpush.msra.mxu0 %v1817
      %2135 = vmatpush.msra.mxu0 %v1816
      %2136 = vmatpush.msra.mxu0 %v1791
      %2137 = vmatpush.msra.mxu0 %v1788
      %2138 = vmatpush.msra.mxu0 %v1767
      %2139 = vmatmul.f32.gmra.mxu0 %v2008
      %v2140 = vpop.f32.mrf.mxu0
      %v2141 = vadd.f32 %v2017, %v2140
      %2142 = vmatmul.f32.gmra.mxu0 %v2010
      %v2143 = vpop.f32.mrf.mxu0
      %v2144 = vadd.f32 %v2022, %v2143
      %2145 = vdwg.mxu0
      %2146 = vmatpush.msra.mxu0 0.0
      %2147 = vmatpush.msra.mxu0 0.0
      %2148 = vmatpush.msra.mxu0 0.0
      %2149 = vmatpush.msra.mxu0 0.0
      %2150 = vmatpush.msra.mxu0 0.0
      %2151 = vmatpush.msra.mxu0 %v2007
      %2152 = vmatpush.msra.mxu0 %v2006
      %2153 = vmatpush.msra.mxu0 %v2005
      %2154 = vmatpush.msra.mxu0 %v1980
      %2155 = vmatpush.msra.mxu0 %v1979
      %2156 = vmatpush.msra.mxu0 %v1978
      %2157 = vmatpush.msra.mxu0 %v1953
      %2158 = vmatpush.msra.mxu0 %v1952
      %2159 = vmatpush.msra.mxu0 %v1951
      %2160 = vmatpush.msra.mxu0 %v1926
      %2161 = vmatpush.msra.mxu0 %v1925
      %2162 = vmatmul.f32.gmra.mxu0 %v2026
      %v2163 = vpop.f32.mrf.mxu0
      %v2164 = vadd.f32 %v2141, %v2163
      %2165 = vmatmul.f32.gmra.mxu0 %v2029
      %v2166 = vpop.f32.mrf.mxu0
      %v2167 = vadd.f32 %v2144, %v2166
      %2168 = vdwg.mxu0
      %v2169 = vmax.f32 %v2072, 0.0
      %v2170 = vmax.f32 %v2118, 0.0
      %v2171 = vmax.f32 %v2164, 0.0
      %v2172 = vmax.f32 %v2075, 0.0
      %v2173 = vmax.f32 %v2121, 0.0
      %v2174 = vmax.f32 %v2167, 0.0
      %2175 = vrot.lane.b32.xlu0 %v2169, 19
      %v2176 = vpop.permute.xlu0 %2175
      %2177 = vrot.lane.b32.xlu0 %v2172, 19
      %v2178 = vpop.permute.xlu0 %2177
      %2179 = vrot.lane.b32.xlu0 %v2170, 19
      %v2180 = vpop.permute.xlu0 %2179
      %2181 = vrot.lane.b32.xlu0 %v2173, 19
      %v2182 = vpop.permute.xlu0 %2181
      %2183 = vrot.lane.b32.xlu0 %v2171, 19
      %v2184 = vpop.permute.xlu0 %2183
      %2185 = vrot.lane.b32.xlu0 %v2174, 19
      %v2186 = vpop.permute.xlu0 %2185
      %v2187 = vsel %vm760, %v2180, %v2184
      %v2188 = vsel %vm760, %v2182, %v2186
      %v2189 = vsel %vm760, %v2176, %v2180
      %v2190 = vsel %vm760, %v2178, %v2182
      %v2191 = vsel %vm760, %v2184, %v2176
      %v2192 = vsel %vm760, %v2186, %v2178
      %v2193 = vmul.f32 %v2191, %v768
      %v2194 = vmul.f32 %v2189, %v769
      %v2195 = vmul.f32 %v2187, %v770
      %v2196 = vmul.f32 %v2192, %v768
      %v2197 = vmul.f32 %v2190, %v769
      %v2198 = vmul.f32 %v2188, %v770
      %2199 = vrot.lane.b32.xlu0 %v2193, 127
      %v2200 = vpop.permute.xlu0 %2199
      %2201 = vrot.lane.b32.xlu0 %v2196, 127
      %v2202 = vpop.permute.xlu0 %2201
      %2203 = vrot.lane.b32.xlu0 %v2194, 127
      %v2204 = vpop.permute.xlu0 %2203
      %2205 = vrot.lane.b32.xlu0 %v2197, 127
      %v2206 = vpop.permute.xlu0 %2205
      %2207 = vrot.lane.b32.xlu0 %v2195, 127
      %v2208 = vpop.permute.xlu0 %2207
      %2209 = vrot.lane.b32.xlu0 %v2198, 127
      %v2210 = vpop.permute.xlu0 %2209
      %v2211 = vsel %vm578, %v2204, %v2208
      %v2212 = vsel %vm578, %v2206, %v2210
      %v2213 = vsel %vm578, %v2200, %v2204
      %v2214 = vsel %vm578, %v2202, %v2206
      %v2215 = vsel %vm578, %v2208, %v2200
      %v2216 = vsel %vm578, %v2210, %v2202
      %2217 = vrot.lane.b32.xlu0 %v2193, 126
      %v2218 = vpop.permute.xlu0 %2217
      %2219 = vrot.lane.b32.xlu0 %v2196, 126
      %v2220 = vpop.permute.xlu0 %2219
      %2221 = vrot.lane.b32.xlu0 %v2194, 126
      %v2222 = vpop.permute.xlu0 %2221
      %2223 = vrot.lane.b32.xlu0 %v2197, 126
      %v2224 = vpop.permute.xlu0 %2223
      %2225 = vrot.lane.b32.xlu0 %v2195, 126
      %v2226 = vpop.permute.xlu0 %2225
      %2227 = vrot.lane.b32.xlu0 %v2198, 126
      %v2228 = vpop.permute.xlu0 %2227
      %v2229 = vsel %vm588, %v2222, %v2226
      %v2230 = vsel %vm588, %v2224, %v2228
      %v2231 = vsel %vm588, %v2218, %v2222
      %v2232 = vsel %vm588, %v2220, %v2224
      %v2233 = vsel %vm588, %v2226, %v2218
      %v2234 = vsel %vm588, %v2228, %v2220
      %2235 = vrot.lane.b32.xlu0 %v2193, 110
      %v2236 = vpop.permute.xlu0 %2235
      %2237 = vrot.lane.b32.xlu0 %v2196, 110
      %v2238 = vpop.permute.xlu0 %2237
      %2239 = vrot.lane.b32.xlu0 %v2194, 110
      %v2240 = vpop.permute.xlu0 %2239
      %2241 = vrot.lane.b32.xlu0 %v2197, 110
      %v2242 = vpop.permute.xlu0 %2241
      %2243 = vrot.lane.b32.xlu0 %v2195, 110
      %v2244 = vpop.permute.xlu0 %2243
      %2245 = vrot.lane.b32.xlu0 %v2198, 110
      %v2246 = vpop.permute.xlu0 %2245
      %v2247 = vsel %vm598, %v2240, %v2244
      %v2248 = vsel %vm598, %v2242, %v2246
      %v2249 = vsel %vm598, %v2236, %v2240
      %v2250 = vsel %vm598, %v2238, %v2242
      %v2251 = vsel %vm598, %v2244, %v2236
      %v2252 = vsel %vm598, %v2246, %v2238
      %2253 = vrot.lane.b32.xlu0 %v2193, 109
      %v2254 = vpop.permute.xlu0 %2253
      %2255 = vrot.lane.b32.xlu0 %v2196, 109
      %v2256 = vpop.permute.xlu0 %2255
      %2257 = vrot.lane.b32.xlu0 %v2194, 109
      %v2258 = vpop.permute.xlu0 %2257
      %2259 = vrot.lane.b32.xlu0 %v2197, 109
      %v2260 = vpop.permute.xlu0 %2259
      %2261 = vrot.lane.b32.xlu0 %v2195, 109
      %v2262 = vpop.permute.xlu0 %2261
      %2263 = vrot.lane.b32.xlu0 %v2198, 109
      %v2264 = vpop.permute.xlu0 %2263
      %v2265 = vsel %vm608, %v2258, %v2262
      %v2266 = vsel %vm608, %v2260, %v2264
      %v2267 = vsel %vm608, %v2254, %v2258
      %v2268 = vsel %vm608, %v2256, %v2260
      %v2269 = vsel %vm608, %v2262, %v2254
      %v2270 = vsel %vm608, %v2264, %v2256
      %2271 = vrot.lane.b32.xlu0 %v2193, 108
      %v2272 = vpop.permute.xlu0 %2271
      %2273 = vrot.lane.b32.xlu0 %v2196, 108
      %v2274 = vpop.permute.xlu0 %2273
      %2275 = vrot.lane.b32.xlu0 %v2194, 108
      %v2276 = vpop.permute.xlu0 %2275
      %2277 = vrot.lane.b32.xlu0 %v2197, 108
      %v2278 = vpop.permute.xlu0 %2277
      %2279 = vrot.lane.b32.xlu0 %v2195, 108
      %v2280 = vpop.permute.xlu0 %2279
      %2281 = vrot.lane.b32.xlu0 %v2198, 108
      %v2282 = vpop.permute.xlu0 %2281
      %v2283 = vsel %vm618, %v2276, %v2280
      %v2284 = vsel %vm618, %v2278, %v2282
      %v2285 = vsel %vm618, %v2272, %v2276
      %v2286 = vsel %vm618, %v2274, %v2278
      %v2287 = vsel %vm618, %v2280, %v2272
      %v2288 = vsel %vm618, %v2282, %v2274
      %2289 = vrot.lane.b32.xlu0 %v2193, 92
      %v2290 = vpop.permute.xlu0 %2289
      %2291 = vrot.lane.b32.xlu0 %v2196, 92
      %v2292 = vpop.permute.xlu0 %2291
      %2293 = vrot.lane.b32.xlu0 %v2194, 92
      %v2294 = vpop.permute.xlu0 %2293
      %2295 = vrot.lane.b32.xlu0 %v2197, 92
      %v2296 = vpop.permute.xlu0 %2295
      %2297 = vrot.lane.b32.xlu0 %v2195, 92
      %v2298 = vpop.permute.xlu0 %2297
      %2299 = vrot.lane.b32.xlu0 %v2198, 92
      %v2300 = vpop.permute.xlu0 %2299
      %v2301 = vsel %vm628, %v2294, %v2298
      %v2302 = vsel %vm628, %v2296, %v2300
      %v2303 = vsel %vm628, %v2290, %v2294
      %v2304 = vsel %vm628, %v2292, %v2296
      %v2305 = vsel %vm628, %v2298, %v2290
      %v2306 = vsel %vm628, %v2300, %v2292
      %2307 = vrot.lane.b32.xlu0 %v2193, 91
      %v2308 = vpop.permute.xlu0 %2307
      %2309 = vrot.lane.b32.xlu0 %v2196, 91
      %v2310 = vpop.permute.xlu0 %2309
      %2311 = vrot.lane.b32.xlu0 %v2194, 91
      %v2312 = vpop.permute.xlu0 %2311
      %2313 = vrot.lane.b32.xlu0 %v2197, 91
      %v2314 = vpop.permute.xlu0 %2313
      %2315 = vrot.lane.b32.xlu0 %v2195, 91
      %v2316 = vpop.permute.xlu0 %2315
      %2317 = vrot.lane.b32.xlu0 %v2198, 91
      %v2318 = vpop.permute.xlu0 %2317
      %v2319 = vsel %vm638, %v2312, %v2316
      %v2320 = vsel %vm638, %v2314, %v2318
      %v2321 = vsel %vm638, %v2308, %v2312
      %v2322 = vsel %vm638, %v2310, %v2314
      %v2323 = vsel %vm638, %v2316, %v2308
      %v2324 = vsel %vm638, %v2318, %v2310
      %2325 = vrot.lane.b32.xlu0 %v2193, 90
      %v2326 = vpop.permute.xlu0 %2325
      %2327 = vrot.lane.b32.xlu0 %v2196, 90
      %v2328 = vpop.permute.xlu0 %2327
      %2329 = vrot.lane.b32.xlu0 %v2194, 90
      %v2330 = vpop.permute.xlu0 %2329
      %2331 = vrot.lane.b32.xlu0 %v2197, 90
      %v2332 = vpop.permute.xlu0 %2331
      %2333 = vrot.lane.b32.xlu0 %v2195, 90
      %v2334 = vpop.permute.xlu0 %2333
      %2335 = vrot.lane.b32.xlu0 %v2198, 90
      %v2336 = vpop.permute.xlu0 %2335
      %v2337 = vsel %vm648, %v2330, %v2334
      %v2338 = vsel %vm648, %v2332, %v2336
      %v2339 = vsel %vm648, %v2326, %v2330
      %v2340 = vsel %vm648, %v2328, %v2332
      %v2341 = vsel %vm648, %v2334, %v2326
      %v2342 = vsel %vm648, %v2336, %v2328
      %v2343 = vld [vmem:[%s13] sm:$0xff]
      %v2344 = vld [vmem:[%s13 + $0x8] sm:$0xff]
      %v2345 = vld [vmem:[%s13 + $0x10] sm:$0xff]
      %v2346 = vld [vmem:[%s13 + $0x18] sm:$0xff]
      %v2347 = vld [vmem:[%s14] sm:$0xff]
      %v2348 = vld [vmem:[%s14 + $0x8] sm:$0xff]
      %2350 = vset.pattern.permute.xlu0 0
      %2351 = vperm.xlu0 %2350, %v2347
      %v2352 = vpop.permute.xlu0 %2351
      %2355 = vset.pattern.permute.xlu0 0
      %2356 = vperm.xlu0 %2355, %v2348
      %v2357 = vpop.permute.xlu0 %2356
      %v2360 = vsel %vm940, %v2344, 0
      %v2363 = vsel %vm940, %v2346, 0
      %2365 = vmatpush.msra.mxu0 %v2322
      %2366 = vmatpush.msra.mxu0 %v2321
      %2367 = vmatpush.msra.mxu0 %v2304
      %2368 = vmatpush.msra.mxu0 %v2303
      %2369 = vmatpush.msra.mxu0 %v2286
      %2370 = vmatpush.msra.mxu0 %v2285
      %2371 = vmatpush.msra.mxu0 %v2268
      %2372 = vmatpush.msra.mxu0 %v2267
      %2373 = vmatpush.msra.mxu0 %v2250
      %2374 = vmatpush.msra.mxu0 %v2249
      %2375 = vmatpush.msra.mxu0 %v2232
      %2376 = vmatpush.msra.mxu0 %v2231
      %2377 = vmatpush.msra.mxu0 %v2214
      %2378 = vmatpush.msra.mxu0 %v2213
      %2379 = vmatpush.msra.mxu0 %v2196
      %2380 = vmatpush.msra.mxu0 %v2193
      %2381 = vmatmul.f32.gmra.mxu0 %v2343
      %v2382 = vpop.f32.mrf.mxu0
      %v2383 = vadd.f32 %v2352, %v2382
      %2384 = vmatmul.f32.gmra.mxu0 %v2345
      %v2385 = vpop.f32.mrf.mxu0
      %v2386 = vadd.f32 %v2357, %v2385
      %2387 = vdwg.mxu0
      %2388 = vmatpush.msra.mxu0 0.0
      %2389 = vmatpush.msra.mxu0 0.0
      %2390 = vmatpush.msra.mxu0 0.0
      %2391 = vmatpush.msra.mxu0 0.0
      %2392 = vmatpush.msra.mxu0 0.0
      %2393 = vmatpush.msra.mxu0 0.0
      %2394 = vmatpush.msra.mxu0 0.0
      %2395 = vmatpush.msra.mxu0 0.0
      %2396 = vmatpush.msra.mxu0 0.0
      %2397 = vmatpush.msra.mxu0 0.0
      %2398 = vmatpush.msra.mxu0 0.0
      %2399 = vmatpush.msra.mxu0 0.0
      %2400 = vmatpush.msra.mxu0 0.0
      %2401 = vmatpush.msra.mxu0 0.0
      %2402 = vmatpush.msra.mxu0 %v2340
      %2403 = vmatpush.msra.mxu0 %v2339
      %2404 = vmatmul.f32.gmra.mxu0 %v2360
      %v2405 = vpop.f32.mrf.mxu0
      %v2406 = vadd.f32 %v2383, %v2405
      %2407 = vmatmul.f32.gmra.mxu0 %v2363
      %v2408 = vpop.f32.mrf.mxu0
      %v2409 = vadd.f32 %v2386, %v2408
      %2410 = vdwg.mxu0
      %2411 = vmatpush.msra.mxu0 %v2320
      %2412 = vmatpush.msra.mxu0 %v2319
      %2413 = vmatpush.msra.mxu0 %v2302
      %2414 = vmatpush.msra.mxu0 %v2301
      %2415 = vmatpush.msra.mxu0 %v2284
      %2416 = vmatpush.msra.mxu0 %v2283
      %2417 = vmatpush.msra.mxu0 %v2266
      %2418 = vmatpush.msra.mxu0 %v2265
      %2419 = vmatpush.msra.mxu0 %v2248
      %2420 = vmatpush.msra.mxu0 %v2247
      %2421 = vmatpush.msra.mxu0 %v2230
      %2422 = vmatpush.msra.mxu0 %v2229
      %2423 = vmatpush.msra.mxu0 %v2212
      %2424 = vmatpush.msra.mxu0 %v2211
      %2425 = vmatpush.msra.mxu0 %v2197
      %2426 = vmatpush.msra.mxu0 %v2194
      %2427 = vmatmul.f32.gmra.mxu0 %v2343
      %v2428 = vpop.f32.mrf.mxu0
      %v2429 = vadd.f32 %v2352, %v2428
      %2430 = vmatmul.f32.gmra.mxu0 %v2345
      %v2431 = vpop.f32.mrf.mxu0
      %v2432 = vadd.f32 %v2357, %v2431
      %2433 = vdwg.mxu0
      %2434 = vmatpush.msra.mxu0 0.0
      %2435 = vmatpush.msra.mxu0 0.0
      %2436 = vmatpush.msra.mxu0 0.0
      %2437 = vmatpush.msra.mxu0 0.0
      %2438 = vmatpush.msra.mxu0 0.0
      %2439 = vmatpush.msra.mxu0 0.0
      %2440 = vmatpush.msra.mxu0 0.0
      %2441 = vmatpush.msra.mxu0 0.0
      %2442 = vmatpush.msra.mxu0 0.0
      %2443 = vmatpush.msra.mxu0 0.0
      %2444 = vmatpush.msra.mxu0 0.0
      %2445 = vmatpush.msra.mxu0 0.0
      %2446 = vmatpush.msra.mxu0 0.0
      %2447 = vmatpush.msra.mxu0 0.0
      %2448 = vmatpush.msra.mxu0 %v2338
      %2449 = vmatpush.msra.mxu0 %v2337
      %2450 = vmatmul.f32.gmra.mxu0 %v2360
      %v2451 = vpop.f32.mrf.mxu0
      %v2452 = vadd.f32 %v2429, %v2451
      %2453 = vmatmul.f32.gmra.mxu0 %v2363
      %v2454 = vpop.f32.mrf.mxu0
      %v2455 = vadd.f32 %v2432, %v2454
      %2456 = vdwg.mxu0
      %2457 = vmatpush.msra.mxu0 %v2324
      %2458 = vmatpush.msra.mxu0 %v2323
      %2459 = vmatpush.msra.mxu0 %v2306
      %2460 = vmatpush.msra.mxu0 %v2305
      %2461 = vmatpush.msra.mxu0 %v2288
      %2462 = vmatpush.msra.mxu0 %v2287
      %2463 = vmatpush.msra.mxu0 %v2270
      %2464 = vmatpush.msra.mxu0 %v2269
      %2465 = vmatpush.msra.mxu0 %v2252
      %2466 = vmatpush.msra.mxu0 %v2251
      %2467 = vmatpush.msra.mxu0 %v2234
      %2468 = vmatpush.msra.mxu0 %v2233
      %2469 = vmatpush.msra.mxu0 %v2216
      %2470 = vmatpush.msra.mxu0 %v2215
      %2471 = vmatpush.msra.mxu0 %v2198
      %2472 = vmatpush.msra.mxu0 %v2195
      %2473 = vmatmul.f32.gmra.mxu0 %v2343
      %v2474 = vpop.f32.mrf.mxu0
      %v2475 = vadd.f32 %v2352, %v2474
      %2476 = vmatmul.f32.gmra.mxu0 %v2345
      %v2477 = vpop.f32.mrf.mxu0
      %v2478 = vadd.f32 %v2357, %v2477
      %2479 = vdwg.mxu0
      %2480 = vmatpush.msra.mxu0 0.0
      %2481 = vmatpush.msra.mxu0 0.0
      %2482 = vmatpush.msra.mxu0 0.0
      %2483 = vmatpush.msra.mxu0 0.0
      %2484 = vmatpush.msra.mxu0 0.0
      %2485 = vmatpush.msra.mxu0 0.0
      %2486 = vmatpush.msra.mxu0 0.0
      %2487 = vmatpush.msra.mxu0 0.0
      %2488 = vmatpush.msra.mxu0 0.0
      %2489 = vmatpush.msra.mxu0 0.0
      %2490 = vmatpush.msra.mxu0 0.0
      %2491 = vmatpush.msra.mxu0 0.0
      %2492 = vmatpush.msra.mxu0 0.0
      %2493 = vmatpush.msra.mxu0 0.0
      %2494 = vmatpush.msra.mxu0 %v2342
      %2495 = vmatpush.msra.mxu0 %v2341
      %2496 = vmatmul.f32.gmra.mxu0 %v2360
      %v2497 = vpop.f32.mrf.mxu0
      %v2498 = vadd.f32 %v2475, %v2497
      %2499 = vmatmul.f32.gmra.mxu0 %v2363
      %v2500 = vpop.f32.mrf.mxu0
      %v2501 = vadd.f32 %v2478, %v2500
      %2502 = vdwg.mxu0
      %v2503 = vmax.f32 %v2406, 0.0
      %v2504 = vmax.f32 %v2452, 0.0
      %v2505 = vmax.f32 %v2498, 0.0
      %v2506 = vmax.f32 %v2409, 0.0
      %v2507 = vmax.f32 %v2455, 0.0
      %v2508 = vmax.f32 %v2501, 0.0
      %v2509 = vld [vmem:[%s15] sm:$0x7]
      %v2510 = vld [vmem:[%s16] sm:$0x7]
      %2512 = vset.pattern.permute.xlu0 0
      %2513 = vperm.xlu0 %2512, %v2510
      %v2514 = vpop.permute.xlu0 %2513
      %vm2516 = vcmask 195584
      %v2518 = vsel %vm2516, %v2509, 0
      %2520 = vmatpush.msra.mxu0 0.0
      %2521 = vmatpush.msra.mxu0 0.0
      %2522 = vmatpush.msra.mxu0 0.0
      %2523 = vmatpush.msra.mxu0 0.0
      %2524 = vmatpush.msra.mxu0 0.0
      %2525 = vmatpush.msra.mxu0 0.0
      %2526 = vmatpush.msra.mxu0 0.0
      %2527 = vmatpush.msra.mxu0 0.0
      %2528 = vmatpush.msra.mxu0 0.0
      %2529 = vmatpush.msra.mxu0 0.0
      %2530 = vmatpush.msra.mxu0 0.0
      %2531 = vmatpush.msra.mxu0 0.0
      %2532 = vmatpush.msra.mxu0 0.0
      %2533 = vmatpush.msra.mxu0 %v610
      %2534 = vmatpush.msra.mxu0 %v2506
      %2535 = vmatpush.msra.mxu0 %v2503
      %2536 = vmatmul.f32.gmra.mxu0 %v2518
      %v2537 = vpop.f32.mrf.mxu0
      %v2538 = vadd.f32 %v2514, %v2537
      %2539 = vdwg.mxu0
      %2540 = vmatpush.msra.mxu0 0.0
      %2541 = vmatpush.msra.mxu0 0.0
      %2542 = vmatpush.msra.mxu0 0.0
      %2543 = vmatpush.msra.mxu0 0.0
      %2544 = vmatpush.msra.mxu0 0.0
      %2545 = vmatpush.msra.mxu0 0.0
      %2546 = vmatpush.msra.mxu0 0.0
      %2547 = vmatpush.msra.mxu0 0.0
      %2548 = vmatpush.msra.mxu0 0.0
      %2549 = vmatpush.msra.mxu0 0.0
      %2550 = vmatpush.msra.mxu0 0.0
      %2551 = vmatpush.msra.mxu0 0.0
      %2552 = vmatpush.msra.mxu0 0.0
      %2553 = vmatpush.msra.mxu0 %v609
      %2554 = vmatpush.msra.mxu0 %v2507
      %2555 = vmatpush.msra.mxu0 %v2504
      %2556 = vmatmul.f32.gmra.mxu0 %v2518
      %v2557 = vpop.f32.mrf.mxu0
      %v2558 = vadd.f32 %v2514, %v2557
      %2559 = vdwg.mxu0
      %2560 = vmatpush.msra.mxu0 0.0
      %2561 = vmatpush.msra.mxu0 0.0
      %2562 = vmatpush.msra.mxu0 0.0
      %2563 = vmatpush.msra.mxu0 0.0
      %2564 = vmatpush.msra.mxu0 0.0
      %2565 = vmatpush.msra.mxu0 0.0
      %2566 = vmatpush.msra.mxu0 0.0
      %2567 = vmatpush.msra.mxu0 0.0
      %2568 = vmatpush.msra.mxu0 0.0
      %2569 = vmatpush.msra.mxu0 0.0
      %2570 = vmatpush.msra.mxu0 0.0
      %2571 = vmatpush.msra.mxu0 0.0
      %2572 = vmatpush.msra.mxu0 0.0
      %2573 = vmatpush.msra.mxu0 %v611
      %2574 = vmatpush.msra.mxu0 %v2508
      %2575 = vmatpush.msra.mxu0 %v2505
      %2576 = vmatmul.f32.gmra.mxu0 %v2518
      %v2577 = vpop.f32.mrf.mxu0
      %v2578 = vadd.f32 %v2514, %v2577
      %2579 = vdwg.mxu0
      %v2582 = vrot.slane %v2558, 4
      %vm2583 = vcmask 1043456
      %v2584 = vsel %vm2583, %v2538, %v2582
      %2586 = vst [vmem:[%s565] sm:$0x77] %v2584
      %2587 = vst [vmem:[%s565 + $0x8] sm:$0x7] %v2578
      %p2588 = scmp.lt.s32.totalorder %s28, 1
      %s2589 = scalar_select %p2588, %s28, 1
      %s2590 = smul.addr %s2589, 3
      %s2591 = smul.addr %s2590, 4
      %s2592 = scalar_lea.vmem %s17, %s2591
      // Predicated region
      $region89: #{encoder_forward.1} parent=87 // pred_check
        %p2593 = pneg %p413
      $region90: #{encoder_forward.1} parent=87 // pred_check_branch
        %2595 = sbr.rel (%p2593) target = $region92
      $region91: #{encoder_forward.1} parent=87 // pred_region
        _
      $region92: #{encoder_forward.1} parent=87 // pred_fallthru
        _
    $region88: #{encoder_forward.1} parent=5 // pred_fallthru
      _
    %p2596 = scmp.le.s32.totalorder 2, %s23
    // Predicated region
    $region93: #{encoder_forward.1} parent=5 // pred_check
      %p2597 = pneg %p2596
    $region94: #{encoder_forward.1} parent=5 // pred_check_branch
      %2599 = sbr.rel (%p2597) target = $region96
    $region95: #{encoder_forward.1} parent=5 // pred_region
      %s2600 = ssub.s32 %s23, 2
      // Predicated region
      $region97: #{encoder_forward.1} parent=95 // pred_check
        %p2601 = pneg %p419
      $region98: #{encoder_forward.1} parent=95 // pred_check_branch
        %2603 = sbr.rel (%p2601) target = $region100
      $region99: #{encoder_forward.1} parent=95 // pred_region
        %p2604 = scmp.lt.s32.totalorder %s29, 1
        %s2605 = scalar_select %p2604, %s29, 1
        %s2606 = smul.addr %s2605, 3
        %s2607 = smul.addr %s2606, 4
        %s2608 = scalar_lea.vmem %s17, %s2607
      $region100: #{encoder_forward.1} parent=95 // pred_fallthru
        _
    $region96: #{encoder_forward.1} parent=5 // pred_fallthru
      _
  $region6: #{encoder_forward.1} parent=0 // loop_footer
    %s27 = sadd.s32 1, %s23
  $region7: #{encoder_forward.1} parent=0 // loop_footer_branch
    %22 = sbr.rel target = $region3
  $region8: #{encoder_forward.1} parent=0 // loop_exit
    _

</llo_original>
